<compile_context>
chip_gen: v7x
topology: tpu7x:2x2x1
jax: 0.10.0
libtpu: 0.0.40
codegen_flags: <defaults>
</compile_context>

<pallas_src>
import functools

import jax
import jax.numpy as jnp
from jax.experimental import pallas as pl
from jax.experimental.pallas import tpu as pltpu


# Keep the per-call VMEM budget safe for v7x (64 MiB physical per TensorCore);
# v5e/v6e (128 MiB) could go higher, but the largest tile footprint here
# (double-buffered 2048x1024 bf16 FC weight tiles) is only ~10 MB.
_VMEM_LIMIT = 48 * 1024 * 1024


# ---------------------------------------------------------------------------
# Helpers
# ---------------------------------------------------------------------------
def _round_up(x, m):
    return ((x + m - 1) // m) * m


def _pick_tile(dim, preferred, align):
    """Largest tile <= preferred that divides `dim` and is a multiple of
    `align`; falls back to the full dim (full-extent blocks are always legal)."""
    if dim <= preferred:
        return dim
    t = (preferred // align) * align
    while t >= align:
        if dim % t == 0:
            return t
        t -= align
    return dim


# ---------------------------------------------------------------------------
# Pallas kernels
# ---------------------------------------------------------------------------
def _matmul_bias_act_kernel(x_ref, w_ref, b_ref, o_ref, acc_ref, *, relu):
    """Tiled matmul. grid = (M_tiles, N_tiles, K_tiles), K (reduction) last.

    f32 accumulation in a VMEM scratch that is initialized with the broadcast
    bias at k == 0 (bias folded into the init); the output block (bf16 for all
    intermediate layers) is written once, at the last K step, with ReLU fused.
    """
    k = pl.program_id(2)

    @pl.when(k == 0)
    def _():
        acc_ref[...] = jnp.broadcast_to(b_ref[...], acc_ref.shape)

    acc_ref[...] += jnp.dot(
        x_ref[...], w_ref[...], preferred_element_type=jnp.float32
    )

    @pl.when(k == pl.num_programs(2) - 1)
    def _():
        out = acc_ref[...]
        if relu:
            out = jnp.maximum(out, 0.0)
        o_ref[...] = out.astype(o_ref.dtype)


def _conv3x3_direct_kernel(x_ref, w_ref, b_ref, o_ref, acc_ref, *, H, W, Cin):
    """Tap-fused direct 3x3 conv for one image and one Cout tile.

    x_ref:  (Pin, Cin) bf16 -- the whole zero-padded image flattened over
            (H + 4, W + 2) rows, so each tap (dy, dx) is a *contiguous*
            length-Pout slice at static offset dy*(W+2)+dx. No im2col array
            ever hits HBM; the activation is read once per grid step.
    w_ref:  (9*Cin, tn) bf16, tap-major (dy, dx, cin) row order.
    b_ref:  (1, tn) f32.
    o_ref:  (Pout, tn) bf16, Pout = H*(W+2); columns W..W+1 of each output row
            are don't-care values the wrapper slices off.
    acc_ref:(Pout, tn) f32 scratch accumulator (bias folded into its init).
    """
    Wp = W + 2
    Pout = H * Wp
    acc_ref[...] = jnp.broadcast_to(b_ref[...], acc_ref.shape)
    for t in range(9):
        dy, dx = t // 3, t % 3
        xs = x_ref[pl.ds(dy * Wp + dx, Pout), :]        # (Pout, Cin)
        wt = w_ref[pl.ds(t * Cin, Cin), :]              # (Cin, tn)
        acc_ref[...] += jnp.dot(xs, wt, preferred_element_type=jnp.float32)
    o_ref[...] = jnp.maximum(acc_ref[...], 0.0).astype(o_ref.dtype)


def _maxpool2x2_kernel(x_ref, o_ref):
    """2x2/stride-2 max pool on a contiguous (tr, 2, Wh, 2*C) view."""
    x = x_ref[...]                                       # (tr, 2, Wh, 2C)
    c = o_ref.shape[-1]
    v = jnp.maximum(x[:, 0, :, :], x[:, 1, :, :])        # vertical max
    o_ref[...] = jnp.maximum(v[:, :, :c], v[:, :, c:])   # horizontal max


# ---------------------------------------------------------------------------
# Pallas wrappers
# ---------------------------------------------------------------------------
def matmul_bias_act(x, w, b, *, relu, out_dtype=jnp.bfloat16):
    """out = act(x @ w + b).

    x: (M, K); w: (K, N) bf16 *pre-prepared* (already cast / N-padded in
    prepare_params); b: (1, N) f32. Output dtype is `out_dtype` (bf16 for
    intermediate layers -> no external recast pass, half the HBM writes).
    """
    M, K = x.shape
    Kw, N = w.shape
    assert K == Kw, (K, Kw)
    x = x.astype(jnp.bfloat16)

    # Shape-aware tiles: FC layers have tiny M (= batch) and are weight-
    # bandwidth bound, so stream large (tk, tn) weight tiles; large-M
    # (conv-style) matmuls use squarer tiles.
    if M <= 256:
        tm = M
        tn = _pick_tile(N, 1024, 128)
        tk = _pick_tile(K, 2048, 128)
    else:
        tm = _pick_tile(M, 512, 8)
        tn = _pick_tile(N, 512, 128)
        tk = _pick_tile(K, 1024, 128)
    # v7x has 2 TensorCores: keep >=2 blocks on a parallel axis when possible.
    if M // tm == 1 and N // tn == 1 and N % 256 == 0:
        tn = N // 2

    grid = (M // tm, N // tn, K // tk)
    kernel = functools.partial(_matmul_bias_act_kernel, relu=relu)
    return pl.pallas_call(
        kernel,
        out_shape=jax.ShapeDtypeStruct((M, N), out_dtype),
        grid_spec=pltpu.PrefetchScalarGridSpec(
            num_scalar_prefetch=0,
            grid=grid,
            in_specs=[
                pl.BlockSpec((tm, tk), lambda i, j, k: (i, k)),
                pl.BlockSpec((tk, tn), lambda i, j, k: (k, j)),
                pl.BlockSpec((1, tn), lambda i, j, k: (0, j)),
            ],
            out_specs=pl.BlockSpec((tm, tn), lambda i, j, k: (i, j)),
            scratch_shapes=[pltpu.VMEM((tm, tn), jnp.float32)],
        ),
        compiler_params=pltpu.CompilerParams(
            dimension_semantics=("parallel", "parallel", "arbitrary"),
            vmem_limit_bytes=_VMEM_LIMIT,
        ),
    )(x, w, b)


def conv3x3_relu_direct(x, wk, b):
    """Conv2d(k=3, pad=1, stride=1) + ReLU, tap-fused (no im2col in HBM).

    x: (B, H, W, Cin) bf16; wk: (9*Cin, Cout) bf16 tap-major; b: (1, Cout) f32.
    """
    B, H, W, Cin = x.shape
    Cout = wk.shape[1]
    Wp = W + 2
    Pin = (H + 4) * Wp        # rows padded (1, 3) so every tap slice is in range
    Pout = H * Wp

    # Cheap XLA pad (~1.13x of the activation) + free contiguous reshape.
    xp = jnp.pad(x, ((0, 0), (1, 3), (1, 1), (0, 0))).reshape(B, Pin, Cin)

    tn = _pick_tile(Cout, 512, 128)
    kernel = functools.partial(_conv3x3_direct_kernel, H=H, W=W, Cin=Cin)
    out = pl.pallas_call(
        kernel,
        out_shape=jax.ShapeDtypeStruct((B, Pout, Cout), jnp.bfloat16),
        grid_spec=pltpu.PrefetchScalarGridSpec(
            num_scalar_prefetch=0,
            grid=(B, Cout // tn),       # batch axis provides >=2 parallel blocks
            in_specs=[
                pl.BlockSpec((None, Pin, Cin), lambda bi, j: (bi, 0, 0)),
                pl.BlockSpec((9 * Cin, tn), lambda bi, j: (0, j)),
                pl.BlockSpec((1, tn), lambda bi, j: (0, j)),
            ],
            out_specs=pl.BlockSpec((None, Pout, tn), lambda bi, j: (bi, 0, j)),
            scratch_shapes=[pltpu.VMEM((Pout, tn), jnp.float32)],
        ),
        compiler_params=pltpu.CompilerParams(
            dimension_semantics=("parallel", "parallel"),
            vmem_limit_bytes=_VMEM_LIMIT,
        ),
    )(xp, wk, b)

    # Drop the 2 don't-care columns per output row (~6% slice, cheap XLA pass).
    return out.reshape(B, H, Wp, Cout)[:, :, :W, :]


def conv3x3_relu_first(x, wk, b):
    """First conv (Cin = 3): bf16 im2col + the tiled matmul kernel. K = 27 is
    padded to 32 so the x tile's lane dim is not a 27-wide fragment. The 9x
    im2col inflation only applies to the tiny 3-channel input here."""
    B, H, W, C = x.shape
    Kp, Cout = wk.shape                     # (32, Cout)
    xp = jnp.pad(x, ((0, 0), (1, 1), (1, 1), (0, 0)))
    cols = [xp[:, dy:dy + H, dx:dx + W, :] for dy in range(3) for dx in range(3)]
    patches = jnp.concatenate(cols, axis=-1)                    # (B, H, W, 27)
    patches = jnp.pad(patches, ((0, 0), (0, 0), (0, 0), (0, Kp - 9 * C)))
    out = matmul_bias_act(patches.reshape(B * H * W, Kp), wk, b, relu=True)
    return out.reshape(B, H, W, Cout)


def maxpool2x2(x):
    """Single-pass 2x2/stride-2 max pool on NHWC input.

    Input block is the contiguous view (B*H/2, 2, W/2, 2C) so each grid step
    is one large contiguous DMA; row tiles are ~256 so per-step pipeline
    overhead is amortized. Output last dim = C (lane-dense for C >= 128).
    """
    B, H, W, C = x.shape
    Hh, Wh = H // 2, W // 2
    R = B * Hh
    x4 = x.reshape(R, 2, Wh, 2 * C)

    tr = _pick_tile(R, 256, 8)
    out = pl.pallas_call(
        _maxpool2x2_kernel,
        out_shape=jax.ShapeDtypeStruct((R, Wh, C), x.dtype),
        grid=(R // tr,),
        in_specs=[pl.BlockSpec((tr, 2, Wh, 2 * C), lambda i: (i, 0, 0, 0))],
        out_specs=pl.BlockSpec((tr, Wh, C), lambda i: (i, 0, 0)),
        compiler_params=pltpu.CompilerParams(
            dimension_semantics=("parallel",),
            vmem_limit_bytes=_VMEM_LIMIT,
        ),
    )(x4)
    return out.reshape(B, Hh, Wh, C)


# ---------------------------------------------------------------------------
# Model: parameters + forward
# ---------------------------------------------------------------------------
def init_params(key, base_dim, num_classes=10):
    """PyTorch-style f32 parameters: conv HWIO (3,3,Cin,Cout) + (Cout,),
    linear (K, N) + (N,)."""
    bd = base_dim
    conv_dims = [
        (3, bd), (bd, bd),                                     # conv_2_block
        (bd, 2 * bd), (2 * bd, 2 * bd),                        # conv_2_block
        (2 * bd, 4 * bd), (4 * bd, 4 * bd), (4 * bd, 4 * bd),  # conv_3_block
        (4 * bd, 8 * bd), (8 * bd, 8 * bd), (8 * bd, 8 * bd),  # conv_3_block
        (8 * bd, 8 * bd), (8 * bd, 8 * bd), (8 * bd, 8 * bd),  # conv_3_block
    ]
    params = {"conv": [], "fc": []}
    for cin, cout in conv_dims:
        key, k1, k2 = jax.random.split(key, 3)
        w = jax.random.normal(k1, (3, 3, cin, cout), jnp.float32) / jnp.sqrt(
            9.0 * cin
        )
        bias = jax.random.normal(k2, (cout,), jnp.float32) * 0.01
        params["conv"].append((w, bias))

    fc_dims = [(8 * bd, 4096), (4096, 4096), (4096, 1000), (1000, num_classes)]
    for kin, kout in fc_dims:
        key, k1, k2 = jax.random.split(key, 3)
        w = jax.random.normal(k1, (kin, kout), jnp.float32) / jnp.sqrt(float(kin))
        bias = jax.random.normal(k2, (kout,), jnp.float32) * 0.01
        params["fc"].append((w, bias))
    return params


def prepare_params(params):
    """One-time parameter prep, OUTSIDE the per-call wrappers / forward pass:
    bf16 cast, tap-major (9*Cin, Cout) conv weights, first-conv K pad 27->32,
    FC N padded to multiples of 128 (next layer's K rows padded to match so
    padded activations flow straight through), biases stored as f32 (1, N)."""
    prep = {"conv": [], "fc": []}
    for li, (w, bias) in enumerate(params["conv"]):
        cin, cout = w.shape[2], w.shape[3]
        wk = w.reshape(9 * cin, cout).astype(jnp.bfloat16)
        if li == 0:
            wk = jnp.pad(wk, ((0, 32 - 9 * cin), (0, 0)))       # K: 27 -> 32
        prep["conv"].append((wk, bias.reshape(1, cout).astype(jnp.float32)))

    k_extra = 0
    for w, bias in params["fc"]:
        kin, n = w.shape
        n_pad = _round_up(n, 128)
        w2 = jnp.pad(w, ((0, k_extra), (0, n_pad - n))).astype(jnp.bfloat16)
        b2 = jnp.pad(bias.reshape(1, n), ((0, 0), (0, n_pad - n))).astype(
            jnp.float32
        )
        prep["fc"].append((w2, b2))
        k_extra = n_pad - n
    return prep


def vgg_forward(x_nchw, params, num_classes=10):
    # NCHW (PyTorch) in -> NHWC/bf16 internally.
    x = jnp.transpose(x_nchw, (0, 2, 3, 1)).astype(jnp.bfloat16)

    idx = 0
    for n_convs in (2, 2, 3, 3, 3):
        for _ in range(n_convs):
            wk, b = params["conv"][idx]
            if idx == 0:
                x = conv3x3_relu_first(x, wk, b)
            else:
                x = conv3x3_relu_direct(x, wk, b)
            idx += 1
        x = maxpool2x2(x)

    # x.view(x.size(0), -1): NHWC (B, 1, 1, 8*bd) -> (B, 8*bd), same as NCHW.
    x = x.reshape(x.shape[0], -1)

    n_fc = len(params["fc"])
    for i, (w, b) in enumerate(params["fc"]):
        last = i == n_fc - 1
        # TODO(synk): nn.Dropout is treated as identity (inference semantics).
        x = matmul_bias_act(
            x, w, b, relu=not last,
            out_dtype=jnp.float32 if last else jnp.bfloat16,
        )
    return x[:, :num_classes]        # drop the lane padding of the classifier head


# ---------------------------------------------------------------------------
if __name__ == "__main__":
    base_dim = 8        # small base_dim; input must be 32x32 so features -> 1x1
    num_classes = 10
    batch = 2

    key = jax.random.PRNGKey(0)
    key, pkey, xkey = jax.random.split(key, 3)
    params = init_params(pkey, base_dim, num_classes)
    prepared = prepare_params(params)          # one-time prep, outside the fwd
    x = jax.random.normal(xkey, (batch, 3, 32, 32), jnp.float32)

    # --- spot-check the tap-fused conv and maxpool kernels against XLA refs ---
    ck1, ck2, ck3 = jax.random.split(jax.random.PRNGKey(1), 3)
    xt = jax.random.normal(ck1, (2, 8, 8, 16), jnp.float32).astype(jnp.bfloat16)
    wt = (jax.random.normal(ck2, (3, 3, 16, 32), jnp.float32) * 0.1).astype(
        jnp.bfloat16
    )
    bt = jax.random.normal(ck3, (32,), jnp.float32) * 0.01
    got = conv3x3_relu_direct(xt, wt.reshape(9 * 16, 32), bt.reshape(1, 32))
    ref = jax.lax.conv_general_dilated(
        xt.astype(jnp.float32), wt.astype(jnp.float32), (1, 1), "SAME",
        dimension_numbers=("NHWC", "HWIO", "NHWC"))
    ref = jnp.maximum(ref + bt, 0.0)
    assert jnp.allclose(got.astype(jnp.float32), ref, rtol=2e-2, atol=2e-2)
    pooled = maxpool2x2(xt)
    pref = xt.reshape(2, 4, 2, 4, 2, 16).max(axis=(2, 4))
    assert jnp.array_equal(pooled, pref)

    fwd = jax.jit(functools.partial(vgg_forward, num_classes=num_classes))
    out = fwd(x, prepared)
    out = jax.block_until_ready(out)

    assert out.shape == (batch, num_classes), out.shape
    assert bool(jnp.all(jnp.isfinite(out)))
    print("KERNEL_OK")
</pallas_src>

<mosaic_0001>
module attributes {stable_mosaic.version = 11 : i64} {
  func.func @_conv3x3_direct_kernel(%arg0: i32, %arg1: i32, %arg2: memref<1x120x16xbf16, #tpu.memory_space<vmem>>, %arg3: memref<144x32xbf16, #tpu.memory_space<vmem>>, %arg4: memref<1x32xf32, #tpu.memory_space<vmem>>, %arg5: memref<1x80x32xbf16, #tpu.memory_space<vmem>>, %arg6: memref<80x32xf32, #tpu.memory_space<vmem>>) attributes {dimension_semantics = [#tpu.dimension_semantics<parallel>, #tpu.dimension_semantics<parallel>], iteration_bounds = array<i64: 2, 1>, scalar_prefetch = 0 : i64, scratch_operands = 1 : i64, tpu.core_type = #tpu.core_type<tc>, window_params = [{transform_indices = @transform_0, window_bounds = array<i64: 1, 120, 16>}, {transform_indices = @transform_1, window_bounds = array<i64: 144, 32>}, {transform_indices = @transform_2, window_bounds = array<i64: 1, 32>}, {transform_indices = @transform_3, window_bounds = array<i64: 1, 80, 32>}]} {
    %c0 = arith.constant 0 : index
    %c0_0 = arith.constant 0 : index
    %0 = vector.load %arg4[%c0, %c0_0] : memref<1x32xf32, #tpu.memory_space<vmem>>, vector<1x32xf32>
    %1 = vector.shape_cast %0 : vector<1x32xf32> to vector<1x32xf32>
    %2 = vector.broadcast %1 : vector<1x32xf32> to vector<80x32xf32>
    %c0_1 = arith.constant 0 : index
    %c0_2 = arith.constant 0 : index
    %3 = vector.load %arg6[%c0_1, %c0_2] : memref<80x32xf32, #tpu.memory_space<vmem>>, vector<80x32xf32>
    tpu.vector_store %arg6[%c0_1, %c0_2], %2 {strides = array<i32>} : memref<80x32xf32, #tpu.memory_space<vmem>>, vector<80x32xf32>,
    %c0_3 = arith.constant 0 : index
    %c0_4 = arith.constant 0 : index
    %c0_5 = arith.constant 0 : index
    %4 = vector.load %arg2[%c0_3, %c0_4, %c0_5] : memref<1x120x16xbf16, #tpu.memory_space<vmem>>, vector<1x80x16xbf16>
    %5 = vector.shape_cast %4 : vector<1x80x16xbf16> to vector<80x16xbf16>
    %c0_6 = arith.constant 0 : index
    %c0_7 = arith.constant 0 : index
    %6 = vector.load %arg3[%c0_6, %c0_7] : memref<144x32xbf16, #tpu.memory_space<vmem>>, vector<16x32xbf16>
    %c0_8 = arith.constant 0 : index
    %c0_9 = arith.constant 0 : index
    %7 = vector.load %arg6[%c0_8, %c0_9] : memref<80x32xf32, #tpu.memory_space<vmem>>, vector<80x32xf32>
    %cst = arith.constant dense<0.000000e+00> : vector<80x32xf32>
    %8 = tpu.matmul %5, %6, %cst {dimension_numbers = #tpu.dot_dimension_numbers<[1], [0], [0], [1], [0, 0, 1, 1], [], []>} : vector<80x16xbf16>, vector<16x32xbf16>, vector<80x32xf32> -> vector<80x32xf32>
    %9 = arith.addf %7, %8 : vector<80x32xf32>
    %c0_10 = arith.constant 0 : index
    %c0_11 = arith.constant 0 : index
    %10 = vector.load %arg6[%c0_10, %c0_11] : memref<80x32xf32, #tpu.memory_space<vmem>>, vector<80x32xf32>
    tpu.vector_store %arg6[%c0_10, %c0_11], %9 {strides = array<i32>} : memref<80x32xf32, #tpu.memory_space<vmem>>, vector<80x32xf32>,
    %c0_12 = arith.constant 0 : index
    %c1 = arith.constant 1 : index
    %c0_13 = arith.constant 0 : index
    %11 = vector.load %arg2[%c0_12, %c1, %c0_13] : memref<1x120x16xbf16, #tpu.memory_space<vmem>>, vector<1x80x16xbf16>
    %12 = vector.shape_cast %11 : vector<1x80x16xbf16> to vector<80x16xbf16>
    %c16 = arith.constant 16 : index
    %c0_14 = arith.constant 0 : index
    %13 = vector.load %arg3[%c16, %c0_14] : memref<144x32xbf16, #tpu.memory_space<vmem>>, vector<16x32xbf16>
    %c0_15 = arith.constant 0 : index
    %c0_16 = arith.constant 0 : index
    %14 = vector.load %arg6[%c0_15, %c0_16] : memref<80x32xf32, #tpu.memory_space<vmem>>, vector<80x32xf32>
    %cst_17 = arith.constant dense<0.000000e+00> : vector<80x32xf32>
    %15 = tpu.matmul %12, %13, %cst_17 {dimension_numbers = #tpu.dot_dimension_numbers<[1], [0], [0], [1], [0, 0, 1, 1], [], []>} : vector<80x16xbf16>, vector<16x32xbf16>, vector<80x32xf32> -> vector<80x32xf32>
    %16 = arith.addf %14, %15 : vector<80x32xf32>
    %c0_18 = arith.constant 0 : index
    %c0_19 = arith.constant 0 : index
    %17 = vector.load %arg6[%c0_18, %c0_19] : memref<80x32xf32, #tpu.memory_space<vmem>>, vector<80x32xf32>
    tpu.vector_store %arg6[%c0_18, %c0_19], %16 {strides = array<i32>} : memref<80x32xf32, #tpu.memory_space<vmem>>, vector<80x32xf32>,
    %c0_20 = arith.constant 0 : index
    %c2 = arith.constant 2 : index
    %c0_21 = arith.constant 0 : index
    %18 = vector.load %arg2[%c0_20, %c2, %c0_21] : memref<1x120x16xbf16, #tpu.memory_space<vmem>>, vector<1x80x16xbf16>
    %19 = vector.shape_cast %18 : vector<1x80x16xbf16> to vector<80x16xbf16>
    %c32 = arith.constant 32 : index
    %c0_22 = arith.constant 0 : index
    %20 = vector.load %arg3[%c32, %c0_22] : memref<144x32xbf16, #tpu.memory_space<vmem>>, vector<16x32xbf16>
    %c0_23 = arith.constant 0 : index
    %c0_24 = arith.constant 0 : index
    %21 = vector.load %arg6[%c0_23, %c0_24] : memref<80x32xf32, #tpu.memory_space<vmem>>, vector<80x32xf32>
    %cst_25 = arith.constant dense<0.000000e+00> : vector<80x32xf32>
    %22 = tpu.matmul %19, %20, %cst_25 {dimension_numbers = #tpu.dot_dimension_numbers<[1], [0], [0], [1], [0, 0, 1, 1], [], []>} : vector<80x16xbf16>, vector<16x32xbf16>, vector<80x32xf32> -> vector<80x32xf32>
    %23 = arith.addf %21, %22 : vector<80x32xf32>
    %c0_26 = arith.constant 0 : index
    %c0_27 = arith.constant 0 : index
    %24 = vector.load %arg6[%c0_26, %c0_27] : memref<80x32xf32, #tpu.memory_space<vmem>>, vector<80x32xf32>
    tpu.vector_store %arg6[%c0_26, %c0_27], %23 {strides = array<i32>} : memref<80x32xf32, #tpu.memory_space<vmem>>, vector<80x32xf32>,
    %c0_28 = arith.constant 0 : index
    %c10 = arith.constant 10 : index
    %c0_29 = arith.constant 0 : index
    %25 = vector.load %arg2[%c0_28, %c10, %c0_29] : memref<1x120x16xbf16, #tpu.memory_space<vmem>>, vector<1x80x16xbf16>
    %26 = vector.shape_cast %25 : vector<1x80x16xbf16> to vector<80x16xbf16>
    %c48 = arith.constant 48 : index
    %c0_30 = arith.constant 0 : index
    %27 = vector.load %arg3[%c48, %c0_30] : memref<144x32xbf16, #tpu.memory_space<vmem>>, vector<16x32xbf16>
    %c0_31 = arith.constant 0 : index
    %c0_32 = arith.constant 0 : index
    %28 = vector.load %arg6[%c0_31, %c0_32] : memref<80x32xf32, #tpu.memory_space<vmem>>, vector<80x32xf32>
    %cst_33 = arith.constant dense<0.000000e+00> : vector<80x32xf32>
    %29 = tpu.matmul %26, %27, %cst_33 {dimension_numbers = #tpu.dot_dimension_numbers<[1], [0], [0], [1], [0, 0, 1, 1], [], []>} : vector<80x16xbf16>, vector<16x32xbf16>, vector<80x32xf32> -> vector<80x32xf32>
    %30 = arith.addf %28, %29 : vector<80x32xf32>
    %c0_34 = arith.constant 0 : index
    %c0_35 = arith.constant 0 : index
    %31 = vector.load %arg6[%c0_34, %c0_35] : memref<80x32xf32, #tpu.memory_space<vmem>>, vector<80x32xf32>
    tpu.vector_store %arg6[%c0_34, %c0_35], %30 {strides = array<i32>} : memref<80x32xf32, #tpu.memory_space<vmem>>, vector<80x32xf32>,
    %c0_36 = arith.constant 0 : index
    %c11 = arith.constant 11 : index
    %c0_37 = arith.constant 0 : index
    %32 = vector.load %arg2[%c0_36, %c11, %c0_37] : memref<1x120x16xbf16, #tpu.memory_space<vmem>>, vector<1x80x16xbf16>
    %33 = vector.shape_cast %32 : vector<1x80x16xbf16> to vector<80x16xbf16>
    %c64 = arith.constant 64 : index
    %c0_38 = arith.constant 0 : index
    %34 = vector.load %arg3[%c64, %c0_38] : memref<144x32xbf16, #tpu.memory_space<vmem>>, vector<16x32xbf16>
    %c0_39 = arith.constant 0 : index
    %c0_40 = arith.constant 0 : index
    %35 = vector.load %arg6[%c0_39, %c0_40] : memref<80x32xf32, #tpu.memory_space<vmem>>, vector<80x32xf32>
    %cst_41 = arith.constant dense<0.000000e+00> : vector<80x32xf32>
    %36 = tpu.matmul %33, %34, %cst_41 {dimension_numbers = #tpu.dot_dimension_numbers<[1], [0], [0], [1], [0, 0, 1, 1], [], []>} : vector<80x16xbf16>, vector<16x32xbf16>, vector<80x32xf32> -> vector<80x32xf32>
    %37 = arith.addf %35, %36 : vector<80x32xf32>
    %c0_42 = arith.constant 0 : index
    %c0_43 = arith.constant 0 : index
    %38 = vector.load %arg6[%c0_42, %c0_43] : memref<80x32xf32, #tpu.memory_space<vmem>>, vector<80x32xf32>
    tpu.vector_store %arg6[%c0_42, %c0_43], %37 {strides = array<i32>} : memref<80x32xf32, #tpu.memory_space<vmem>>, vector<80x32xf32>,
    %c0_44 = arith.constant 0 : index
    %c12 = arith.constant 12 : index
    %c0_45 = arith.constant 0 : index
    %39 = vector.load %arg2[%c0_44, %c12, %c0_45] : memref<1x120x16xbf16, #tpu.memory_space<vmem>>, vector<1x80x16xbf16>
    %40 = vector.shape_cast %39 : vector<1x80x16xbf16> to vector<80x16xbf16>
    %c80 = arith.constant 80 : index
    %c0_46 = arith.constant 0 : index
    %41 = vector.load %arg3[%c80, %c0_46] : memref<144x32xbf16, #tpu.memory_space<vmem>>, vector<16x32xbf16>
    %c0_47 = arith.constant 0 : index
    %c0_48 = arith.constant 0 : index
    %42 = vector.load %arg6[%c0_47, %c0_48] : memref<80x32xf32, #tpu.memory_space<vmem>>, vector<80x32xf32>
    %cst_49 = arith.constant dense<0.000000e+00> : vector<80x32xf32>
    %43 = tpu.matmul %40, %41, %cst_49 {dimension_numbers = #tpu.dot_dimension_numbers<[1], [0], [0], [1], [0, 0, 1, 1], [], []>} : vector<80x16xbf16>, vector<16x32xbf16>, vector<80x32xf32> -> vector<80x32xf32>
    %44 = arith.addf %42, %43 : vector<80x32xf32>
    %c0_50 = arith.constant 0 : index
    %c0_51 = arith.constant 0 : index
    %45 = vector.load %arg6[%c0_50, %c0_51] : memref<80x32xf32, #tpu.memory_space<vmem>>, vector<80x32xf32>
    tpu.vector_store %arg6[%c0_50, %c0_51], %44 {strides = array<i32>} : memref<80x32xf32, #tpu.memory_space<vmem>>, vector<80x32xf32>,
    %c0_52 = arith.constant 0 : index
    %c20 = arith.constant 20 : index
    %c0_53 = arith.constant 0 : index
    %46 = vector.load %arg2[%c0_52, %c20, %c0_53] : memref<1x120x16xbf16, #tpu.memory_space<vmem>>, vector<1x80x16xbf16>
    %47 = vector.shape_cast %46 : vector<1x80x16xbf16> to vector<80x16xbf16>
    %c96 = arith.constant 96 : index
    %c0_54 = arith.constant 0 : index
    %48 = vector.load %arg3[%c96, %c0_54] : memref<144x32xbf16, #tpu.memory_space<vmem>>, vector<16x32xbf16>
    %c0_55 = arith.constant 0 : index
    %c0_56 = arith.constant 0 : index
    %49 = vector.load %arg6[%c0_55, %c0_56] : memref<80x32xf32, #tpu.memory_space<vmem>>, vector<80x32xf32>
    %cst_57 = arith.constant dense<0.000000e+00> : vector<80x32xf32>
    %50 = tpu.matmul %47, %48, %cst_57 {dimension_numbers = #tpu.dot_dimension_numbers<[1], [0], [0], [1], [0, 0, 1, 1], [], []>} : vector<80x16xbf16>, vector<16x32xbf16>, vector<80x32xf32> -> vector<80x32xf32>
    %51 = arith.addf %49, %50 : vector<80x32xf32>
    %c0_58 = arith.constant 0 : index
    %c0_59 = arith.constant 0 : index
    %52 = vector.load %arg6[%c0_58, %c0_59] : memref<80x32xf32, #tpu.memory_space<vmem>>, vector<80x32xf32>
    tpu.vector_store %arg6[%c0_58, %c0_59], %51 {strides = array<i32>} : memref<80x32xf32, #tpu.memory_space<vmem>>, vector<80x32xf32>,
    %c0_60 = arith.constant 0 : index
    %c21 = arith.constant 21 : index
    %c0_61 = arith.constant 0 : index
    %53 = vector.load %arg2[%c0_60, %c21, %c0_61] : memref<1x120x16xbf16, #tpu.memory_space<vmem>>, vector<1x80x16xbf16>
    %54 = vector.shape_cast %53 : vector<1x80x16xbf16> to vector<80x16xbf16>
    %c112 = arith.constant 112 : index
    %c0_62 = arith.constant 0 : index
    %55 = vector.load %arg3[%c112, %c0_62] : memref<144x32xbf16, #tpu.memory_space<vmem>>, vector<16x32xbf16>
    %c0_63 = arith.constant 0 : index
    %c0_64 = arith.constant 0 : index
    %56 = vector.load %arg6[%c0_63, %c0_64] : memref<80x32xf32, #tpu.memory_space<vmem>>, vector<80x32xf32>
    %cst_65 = arith.constant dense<0.000000e+00> : vector<80x32xf32>
    %57 = tpu.matmul %54, %55, %cst_65 {dimension_numbers = #tpu.dot_dimension_numbers<[1], [0], [0], [1], [0, 0, 1, 1], [], []>} : vector<80x16xbf16>, vector<16x32xbf16>, vector<80x32xf32> -> vector<80x32xf32>
    %58 = arith.addf %56, %57 : vector<80x32xf32>
    %c0_66 = arith.constant 0 : index
    %c0_67 = arith.constant 0 : index
    %59 = vector.load %arg6[%c0_66, %c0_67] : memref<80x32xf32, #tpu.memory_space<vmem>>, vector<80x32xf32>
    tpu.vector_store %arg6[%c0_66, %c0_67], %58 {strides = array<i32>} : memref<80x32xf32, #tpu.memory_space<vmem>>, vector<80x32xf32>,
    %c0_68 = arith.constant 0 : index
    %c22 = arith.constant 22 : index
    %c0_69 = arith.constant 0 : index
    %60 = vector.load %arg2[%c0_68, %c22, %c0_69] : memref<1x120x16xbf16, #tpu.memory_space<vmem>>, vector<1x80x16xbf16>
    %61 = vector.shape_cast %60 : vector<1x80x16xbf16> to vector<80x16xbf16>
    %c128 = arith.constant 128 : index
    %c0_70 = arith.constant 0 : index
    %62 = vector.load %arg3[%c128, %c0_70] : memref<144x32xbf16, #tpu.memory_space<vmem>>, vector<16x32xbf16>
    %c0_71 = arith.constant 0 : index
    %c0_72 = arith.constant 0 : index
    %63 = vector.load %arg6[%c0_71, %c0_72] : memref<80x32xf32, #tpu.memory_space<vmem>>, vector<80x32xf32>
    %cst_73 = arith.constant dense<0.000000e+00> : vector<80x32xf32>
    %64 = tpu.matmul %61, %62, %cst_73 {dimension_numbers = #tpu.dot_dimension_numbers<[1], [0], [0], [1], [0, 0, 1, 1], [], []>} : vector<80x16xbf16>, vector<16x32xbf16>, vector<80x32xf32> -> vector<80x32xf32>
    %65 = arith.addf %63, %64 : vector<80x32xf32>
    %c0_74 = arith.constant 0 : index
    %c0_75 = arith.constant 0 : index
    %66 = vector.load %arg6[%c0_74, %c0_75] : memref<80x32xf32, #tpu.memory_space<vmem>>, vector<80x32xf32>
    tpu.vector_store %arg6[%c0_74, %c0_75], %65 {strides = array<i32>} : memref<80x32xf32, #tpu.memory_space<vmem>>, vector<80x32xf32>,
    %c0_76 = arith.constant 0 : index
    %c0_77 = arith.constant 0 : index
    %67 = vector.load %arg6[%c0_76, %c0_77] : memref<80x32xf32, #tpu.memory_space<vmem>>, vector<80x32xf32>
    %cst_78 = arith.constant 0.000000e+00 : f32
    %68 = vector.broadcast %cst_78 : f32 to vector<80x32xf32>
    %69 = arith.maximumf %67, %68 : vector<80x32xf32>
    %70 = arith.truncf %69 : vector<80x32xf32> to vector<80x32xbf16>
    %c0_79 = arith.constant 0 : index
    %c0_80 = arith.constant 0 : index
    %c0_81 = arith.constant 0 : index
    %71 = vector.load %arg5[%c0_79, %c0_80, %c0_81] : memref<1x80x32xbf16, #tpu.memory_space<vmem>>, vector<1x80x32xbf16>
    %72 = vector.shape_cast %71 : vector<1x80x32xbf16> to vector<80x32xbf16>
    %73 = vector.shape_cast %70 : vector<80x32xbf16> to vector<1x80x32xbf16>
    tpu.vector_store %arg5[%c0_79, %c0_80, %c0_81], %73 {strides = array<i32>} : memref<1x80x32xbf16, #tpu.memory_space<vmem>>, vector<1x80x32xbf16>,
    return
  }
  func.func @transform_0(%arg0: i32, %arg1: i32) -> (i32, i32, i32) {
    %c0_i32 = arith.constant 0 : i32
    %c0_i32_0 = arith.constant 0 : i32
    %c0_i32_1 = arith.constant 0 : i32
    return %arg0, %c0_i32, %c0_i32_0 : i32, i32, i32
  }
  func.func @transform_1(%arg0: i32, %arg1: i32) -> (i32, i32) {
    %c0_i32 = arith.constant 0 : i32
    %c0_i32_0 = arith.constant 0 : i32
    return %c0_i32, %arg1 : i32, i32
  }
  func.func @transform_2(%arg0: i32, %arg1: i32) -> (i32, i32) {
    %c0_i32 = arith.constant 0 : i32
    %c0_i32_0 = arith.constant 0 : i32
    return %c0_i32, %arg1 : i32, i32
  }
  func.func @transform_3(%arg0: i32, %arg1: i32) -> (i32, i32, i32) {
    %c0_i32 = arith.constant 0 : i32
    %c0_i32_0 = arith.constant 0 : i32
    return %arg0, %c0_i32, %arg1 : i32, i32, i32
  }
}

</mosaic_0001>

<llo_original>
// kernel: tpu_custom_call.1
$region0: #{tpu_custom_call.1}
  #allocation0 [shape = 'u32[]', space=smem, size = 0x4, offset = 0x4, fixed_abs, tag = 'smem constant byte address 0x4 - core index']
  #allocation1 [shape = 'u32[144,128]{1,0:T(1,128)}', space=vmem, size = 0x12000, scoped, tag = 'internal scratch']
  #allocation2 [shape = 'f32[80,32]{1,0:T(8,128)}', space=vmem, size = 0xa000, scoped, tag = 'scratch operand']
  %s0 = inlined_call_operand.vmem [shape: bf16[2,120,16], index: 0, kind: input, shape index: {}]
  %s1 = inlined_call_operand.vmem [shape: bf16[144,32], index: 1, kind: input, shape index: {}]
  %s2 = inlined_call_operand.vmem [shape: f32[1,32], index: 2, kind: input, shape index: {}]
  %s3 = inlined_call_operand.vmem [shape: bf16[2,80,32], index: 3, kind: output, shape index: {}]
  %s4 = sld [smem:[#allocation0]]
  $region45: #{tpu_custom_call.1} parent=0
    _
  %s6 = ssub.s32 1, %s4
  %s7 = scalar_select 0, %s6, %s4
  loop: start=0, step=1, limit=4
  $region2: #{tpu_custom_call.1} parent=0 // loop_pre_header
    _
  $region3: #{tpu_custom_call.1} parent=0 // loop_header
    %s9 = sphi 0, %s13
    %p10 = scmp.ge.s32.totalorder %s9, 4
    %s16 = sphi 0, %s28
    %s17 = sphi 0, %s24
    %s18 = sphi 0, %s16
    %s19 = sphi 0, %s17
    %s20 = sphi 0, %s18
    %s21 = sphi 0, %s19
    %s31 = sphi 0, %s33
    %s34 = sphi 0, %s31
    %s35 = sphi 0, %s34
    %s51 = sphi 0, %s35
    %s57 = sphi 0, %s59
    %s60 = sphi 0, %s57
    %s61 = sphi 0, %s60
    %s77 = sphi 0, %s61
    %s83 = sphi 0, %s85
    %s86 = sphi 0, %s83
    %s87 = sphi 0, %s86
    %s103 = sphi 0, %s87
    %s111 = sphi 0, %s113
    %s114 = sphi 0, %s111
    %s115 = sphi 0, %s114
    %s131 = sphi 0, %s115
  $region4: #{tpu_custom_call.1} parent=0 // loop_header_branch
    %12 = sbr.rel (%p10) target = $region8
  $region5: #{tpu_custom_call.1} parent=0 // loop_body
    %s14 = ssub.s32 %s9, 1
    %s15 = ssub.s32 %s9, 2
    %s22 = sadd.s32 1, %s17
    %p23 = scmp.ge.s32.totalorder %s22, 1
    %s24 = scalar_select %p23, 0, %s22
    %s25 = sadd.s32 1, %s16
    %s26 = scalar_select %p23, %s25, %s16
    %p27 = scmp.ge.s32.totalorder %s26, 2
    %s28 = scalar_select %p27, 0, %s26
    %s29 = ssub.s32 %s16, %s28
    %p30 = scmp.eq.s32.totalorder %s29, 0
    %s32 = sadd.s32 %s31, 1
    %s33 = scalar_select %p30, %s31, %s32
    %p36 = pneg %p30
    %p37 = scmp.eq.s32.totalorder %s9, 1
    %p38 = por %p36, %p37
    %p39 = scmp.ne.s32.totalorder %s31, %s34
    %p40 = scmp.eq.s32.totalorder %s9, 0
    %p41 = por %p39, %p40
    %p42 = scmp.ne.s32.totalorder %s31, %s34
    %p43 = scmp.eq.s32.totalorder %s14, 1
    %p44 = por %p42, %p43
    %p45 = scmp.ne.s32.totalorder %s34, %s35
    %p46 = scmp.eq.s32.totalorder %s14, 0
    %p47 = por %p45, %p46
    %p48 = scmp.ne.s32.totalorder %s34, %s35
    %p49 = scmp.eq.s32.totalorder %s15, 1
    %p50 = por %p48, %p49
    %p52 = scmp.ne.s32.totalorder %s35, %s51
    %p53 = scmp.eq.s32.totalorder %s15, 0
    %p54 = por %p52, %p53
    %s55 = ssub.s32 %s17, %s24
    %p56 = scmp.eq.s32.totalorder %s55, 0
    %s58 = sadd.s32 %s57, 1
    %s59 = scalar_select %p56, %s57, %s58
    %p62 = pneg %p56
    %p63 = scmp.eq.s32.totalorder %s9, 1
    %p64 = por %p62, %p63
    %p65 = scmp.ne.s32.totalorder %s57, %s60
    %p66 = scmp.eq.s32.totalorder %s9, 0
    %p67 = por %p65, %p66
    %p68 = scmp.ne.s32.totalorder %s57, %s60
    %p69 = scmp.eq.s32.totalorder %s14, 1
    %p70 = por %p68, %p69
    %p71 = scmp.ne.s32.totalorder %s60, %s61
    %p72 = scmp.eq.s32.totalorder %s14, 0
    %p73 = por %p71, %p72
    %p74 = scmp.ne.s32.totalorder %s60, %s61
    %p75 = scmp.eq.s32.totalorder %s15, 1
    %p76 = por %p74, %p75
    %p78 = scmp.ne.s32.totalorder %s61, %s77
    %p79 = scmp.eq.s32.totalorder %s15, 0
    %p80 = por %p78, %p79
    %s81 = ssub.s32 %s17, %s24
    %p82 = scmp.eq.s32.totalorder %s81, 0
    %s84 = sadd.s32 %s83, 1
    %s85 = scalar_select %p82, %s83, %s84
    %p88 = pneg %p82
    %p89 = scmp.eq.s32.totalorder %s9, 1
    %p90 = por %p88, %p89
    %p91 = scmp.ne.s32.totalorder %s83, %s86
    %p92 = scmp.eq.s32.totalorder %s9, 0
    %p93 = por %p91, %p92
    %p94 = scmp.ne.s32.totalorder %s83, %s86
    %p95 = scmp.eq.s32.totalorder %s14, 1
    %p96 = por %p94, %p95
    %p97 = scmp.ne.s32.totalorder %s86, %s87
    %p98 = scmp.eq.s32.totalorder %s14, 0
    %p99 = por %p97, %p98
    %p100 = scmp.ne.s32.totalorder %s86, %s87
    %p101 = scmp.eq.s32.totalorder %s15, 1
    %p102 = por %p100, %p101
    %p104 = scmp.ne.s32.totalorder %s87, %s103
    %p105 = scmp.eq.s32.totalorder %s15, 0
    %p106 = por %p104, %p105
    %s107 = ssub.s32 %s16, %s28
    %s108 = ssub.s32 %s17, %s24
    %s109 = sor.u32 %s107, %s108
    %p110 = scmp.eq.s32.totalorder %s109, 0
    %s112 = sadd.s32 %s111, 1
    %s113 = scalar_select %p110, %s111, %s112
    %p116 = pneg %p110
    %p117 = scmp.eq.s32.totalorder %s9, 1
    %p118 = por %p116, %p117
    %p119 = scmp.ne.s32.totalorder %s111, %s114
    %p120 = scmp.eq.s32.totalorder %s9, 0
    %p121 = por %p119, %p120
    %p122 = scmp.ne.s32.totalorder %s111, %s114
    %p123 = scmp.eq.s32.totalorder %s14, 1
    %p124 = por %p122, %p123
    %p125 = scmp.ne.s32.totalorder %s114, %s115
    %p126 = scmp.eq.s32.totalorder %s14, 0
    %p127 = por %p125, %p126
    %p128 = scmp.ne.s32.totalorder %s114, %s115
    %p129 = scmp.eq.s32.totalorder %s15, 1
    %p130 = por %p128, %p129
    %p132 = scmp.ne.s32.totalorder %s115, %s131
    %p133 = scmp.eq.s32.totalorder %s15, 0
    %p134 = por %p132, %p133
    %p135 = scmp.le.s32.totalorder 1, %s9
    %p136 = scmp.lt.s32.totalorder %s9, 3
    %p137 = pnand %p135, %p136
    %p138 = pneg %p137
    // Predicated region
    $region9: #{tpu_custom_call.1} parent=5 // pred_check
      _
    $region10: #{tpu_custom_call.1} parent=5 // pred_check_branch
      %140 = sbr.rel (%p137) target = $region12
    $region11: #{tpu_custom_call.1} parent=5 // pred_region
      %s141 = ssub.s32 %s9, 1
      // Predicated region
      $region13: #{tpu_custom_call.1} parent=11 // pred_check
        %p142 = pneg %p73
      $region14: #{tpu_custom_call.1} parent=11 // pred_check_branch
        %144 = sbr.rel (%p142) target = $region16
      $region15: #{tpu_custom_call.1} parent=11 // pred_region
        %p145 = scmp.lt.s32.totalorder %s19, 0
        %s146 = scalar_select %p145, %s19, 0
        %s147 = smul.addr %s146, 4
        %s148 = scalar_lea.vmem %s1, %s147
      $region16: #{tpu_custom_call.1} parent=11 // pred_fallthru
        _
      // Predicated region
      $region17: #{tpu_custom_call.1} parent=11 // pred_check
        %p149 = pneg %p99
      $region18: #{tpu_custom_call.1} parent=11 // pred_check_branch
        %151 = sbr.rel (%p149) target = $region20
      $region19: #{tpu_custom_call.1} parent=11 // pred_region
        %p152 = scmp.lt.s32.totalorder %s19, 0
        %s153 = scalar_select %p152, %s19, 0
        %s154 = scalar_lea.vmem %s2, %s153
      $region20: #{tpu_custom_call.1} parent=11 // pred_fallthru
        _
    $region12: #{tpu_custom_call.1} parent=5 // pred_fallthru
      _
    %p155 = scmp.lt.s32.totalorder %s9, 2
    // Predicated region
    $region21: #{tpu_custom_call.1} parent=5 // pred_check
      %p156 = pneg %p155
    $region22: #{tpu_custom_call.1} parent=5 // pred_check_branch
      %158 = sbr.rel (%p156) target = $region24
    $region23: #{tpu_custom_call.1} parent=5 // pred_region
      // Predicated region
      $region25: #{tpu_custom_call.1} parent=23 // pred_check
        %p159 = pneg %p41
      $region26: #{tpu_custom_call.1} parent=23 // pred_check_branch
        %161 = sbr.rel (%p159) target = $region28
      $region27: #{tpu_custom_call.1} parent=23 // pred_region
        %p162 = scmp.lt.s32.totalorder %s16, 1
        %s163 = scalar_select %p162, %s16, 1
        %s164 = smul.addr %s163, 15
        %s165 = smul.addr %s164, 4
        %s166 = scalar_lea.vmem %s0, %s165
      $region28: #{tpu_custom_call.1} parent=23 // pred_fallthru
        _
    $region24: #{tpu_custom_call.1} parent=5 // pred_fallthru
      _
    %p167 = scmp.le.s32.totalorder 1, %s9
    %p168 = scmp.lt.s32.totalorder %s9, 3
    %p169 = pnand %p167, %p168
    %p170 = pneg %p169
    // Predicated region
    $region29: #{tpu_custom_call.1} parent=5 // pred_check
      _
    $region30: #{tpu_custom_call.1} parent=5 // pred_check_branch
      %172 = sbr.rel (%p169) target = $region32
    $region31: #{tpu_custom_call.1} parent=5 // pred_region
      %s173 = ssub.s32 %s9, 1
      %p174 = scmp.lt.s32.totalorder %s18, 1
      %s175 = scalar_select %p174, %s18, 1
      %s176 = smul.addr %s175, 15
      %s177 = smul.addr %s176, 4
      %s178 = scalar_lea.vmem %s0, %s177
      %p179 = pneg %p47
      %p180 = pneg %p44
      %p181 = scmp.lt.s32.totalorder %s19, 0
      %s182 = scalar_select %p181, %s19, 0
      %s183 = smul.addr %s182, 4
      %s184 = scalar_lea.vmem %s1, %s183
      %p185 = pneg %p73
      %p186 = pneg %p70
      %p187 = scmp.lt.s32.totalorder %s19, 0
      %s188 = scalar_select %p187, %s19, 0
      %s189 = scalar_lea.vmem %s2, %s188
      %p190 = pneg %p99
      %p191 = pneg %p96
      %p192 = pneg %p127
      %p193 = pneg %p124
      %p194 = scmp.lt.s32.totalorder %s18, 1
      %s195 = scalar_select %p194, %s18, 1
      %p196 = scmp.lt.s32.totalorder %s19, 0
      %s197 = scalar_select %p196, %s19, 0
      %s198 = smul.addr %s195, 10
      %s199 = sadd.s32 %s197, %s198
      %s200 = smul.addr %s199, 4
      %s201 = scalar_lea.vmem %s3, %s200
      %p202 = scmp.lt.s32.totalorder %s18, 1
      %s203 = scalar_select %p202, %s18, 1
      %s204 = smul.addr %s203, 15
      %s205 = smul.addr %s204, 4
      %s206 = scalar_lea.vmem %s0, %s205
      %p207 = scmp.lt.s32.totalorder %s19, 0
      %s208 = scalar_select %p207, %s19, 0
      %s209 = smul.addr %s208, 4
      %s210 = scalar_lea.vmem %s1, %s209
      %p211 = scmp.lt.s32.totalorder %s19, 0
      %s212 = scalar_select %p211, %s19, 0
      %s213 = scalar_lea.vmem %s2, %s212
      %p214 = scmp.lt.s32.totalorder %s18, 1
      %s215 = scalar_select %p214, %s18, 1
      %p216 = scmp.lt.s32.totalorder %s19, 0
      %s217 = scalar_select %p216, %s19, 0
      %s218 = smul.addr %s215, 10
      %s219 = sadd.s32 %s217, %s218
      %s220 = smul.addr %s219, 4
      %s221 = scalar_lea.vmem %s3, %s220
      %v223 = vld [vmem:[%s213] sm:$0x1]
      %v225 = vlaneseq
      %v226 = vshrl.u32 %v225, 7
      %v227 = vsub.s32 0, %v226
      %v228 = vrot.slane %v223, %v227
      %vm230 = vcmask 261120
      %231 = vst.msk [vmem:[#allocation2] sm:$0xff] %vm230, %v228
      %232 = vst.msk [vmem:[#allocation2 + $0x8] sm:$0xff] %vm230, %v228
      %233 = vst.msk [vmem:[#allocation2 + $0x10] sm:$0xff] %vm230, %v228
      %234 = vst.msk [vmem:[#allocation2 + $0x18] sm:$0xff] %vm230, %v228
      %235 = vst.msk [vmem:[#allocation2 + $0x20] sm:$0xff] %vm230, %v228
      %236 = vst.msk [vmem:[#allocation2 + $0x28] sm:$0xff] %vm230, %v228
      %237 = vst.msk [vmem:[#allocation2 + $0x30] sm:$0xff] %vm230, %v228
      %238 = vst.msk [vmem:[#allocation2 + $0x38] sm:$0xff] %vm230, %v228
      %239 = vst.msk [vmem:[#allocation2 + $0x40] sm:$0xff] %vm230, %v228
      %240 = vst.msk [vmem:[#allocation2 + $0x48] sm:$0xff] %vm230, %v228
      %v241 = vld [vmem:[%s206] sm:$0xf]
      %v242 = vld [vmem:[%s206 + $0x4] sm:$0xf]
      %v243 = vld [vmem:[%s206 + $0x8] sm:$0xf]
      %v244 = vld [vmem:[%s206 + $0xc] sm:$0xf]
      %v245 = vld [vmem:[%s206 + $0x10] sm:$0xf]
      %v246 = vld [vmem:[%s206 + $0x14] sm:$0xf]
      %v247 = vld [vmem:[%s206 + $0x18] sm:$0xf]
      %v248 = vld [vmem:[%s206 + $0x1c] sm:$0xf]
      %v249 = vld [vmem:[%s206 + $0x20] sm:$0xf]
      %v250 = vld [vmem:[%s206 + $0x24] sm:$0xf]
      %v251 = vld [vmem:[%s210] sm:$0xf]
      %v252 = vld [vmem:[%s210 + $0x4] sm:$0xf]
      %v253 = vld [vmem:[#allocation2] sm:$0xff]
      %v254 = vld [vmem:[#allocation2 + $0x8] sm:$0xff]
      %v255 = vld [vmem:[#allocation2 + $0x10] sm:$0xff]
      %v256 = vld [vmem:[#allocation2 + $0x18] sm:$0xff]
      %v257 = vld [vmem:[#allocation2 + $0x20] sm:$0xff]
      %v258 = vld [vmem:[#allocation2 + $0x28] sm:$0xff]
      %v259 = vld [vmem:[#allocation2 + $0x30] sm:$0xff]
      %v260 = vld [vmem:[#allocation2 + $0x38] sm:$0xff]
      %v261 = vld [vmem:[#allocation2 + $0x40] sm:$0xff]
      %v262 = vld [vmem:[#allocation2 + $0x48] sm:$0xff]
      %v273 = vunpack.c.l.b16 %v241
      %v274 = vunpack.c.l.b16 %v242
      %v275 = vunpack.c.l.b16 %v243
      %v276 = vunpack.c.l.b16 %v244
      %v277 = vunpack.c.l.b16 %v245
      %v278 = vunpack.c.l.b16 %v246
      %v279 = vunpack.c.l.b16 %v247
      %v280 = vunpack.c.l.b16 %v248
      %v281 = vunpack.c.l.b16 %v249
      %v282 = vunpack.c.l.b16 %v250
      %v283 = vpack.c.b16 %v274, %v273
      %v284 = vpack.c.b16 %v276, %v275
      %v285 = vpack.c.b16 %v278, %v277
      %v286 = vpack.c.b16 %v280, %v279
      %v287 = vpack.c.b16 %v282, %v281
      %v290 = vunpack.c.l.b16 %v251
      %v291 = vunpack.c.l.b16 %v252
      %v292 = vpack.c.b16 %v291, %v290
      %vm294 = vcmask 130048
      %v296 = vsel %vm294, %v283, 0
      %v299 = vsel %vm294, %v284, 0
      %v302 = vsel %vm294, %v285, 0
      %v305 = vsel %vm294, %v286, 0
      %v308 = vsel %vm294, %v287, 0
      %310 = vmatprep.subr.bf16.mxu0 0
      %311 = vmatpush1.bf16.msra.mxu0 %v292
      %312 = vmatprep.subr.bf16.mxu0 0
      %313 = vmatpush1.bf16.msra.mxu0 0
      %314 = vmatprep.subr.bf16.mxu0 0
      %315 = vmatpush1.bf16.msra.mxu0 0
      %316 = vmatprep.subr.bf16.mxu0 0
      %317 = vmatpush1.bf16.msra.mxu0 0
      %318 = vmatprep.subr.bf16.mxu0 0
      %319 = vmatpush1.bf16.msra.mxu0 0
      %320 = vmatprep.subr.bf16.mxu0 0
      %321 = vmatpush1.bf16.msra.mxu0 0
      %322 = vmatprep.subr.bf16.mxu0 0
      %323 = vmatpush1.bf16.msra.mxu0 0
      %324 = vmatprep.subr.bf16.mxu0 0
      %325 = vmatpush1.bf16.msra.mxu0 0
      %326 = vmatprep.subr.bf16.mxu0 0
      %327 = vmatpush1.bf16.msra.mxu0 0
      %328 = vmatprep.subr.bf16.mxu0 0
      %329 = vmatpush1.bf16.msra.mxu0 0
      %330 = vmatprep.subr.bf16.mxu0 0
      %331 = vmatpush1.bf16.msra.mxu0 0
      %332 = vmatprep.subr.bf16.mxu0 0
      %333 = vmatpush1.bf16.msra.mxu0 0
      %334 = vmatprep.subr.bf16.mxu0 0
      %335 = vmatpush1.bf16.msra.mxu0 0
      %336 = vmatprep.subr.bf16.mxu0 0
      %337 = vmatpush1.bf16.msra.mxu0 0
      %338 = vmatprep.subr.bf16.mxu0 0
      %339 = vmatpush1.bf16.msra.mxu0 0
      %340 = vmatprep.subr.bf16.mxu0 0
      %341 = vmatpush1.bf16.msra.mxu0 0
      %342 = vmatprep.mubr.bf16.mxu0 0
      %343 = vmatmul.mubr.bf16.gmra.mrb[0].mxu0 %v296
      %v344 = vpop.f32.mrb[0].mxu0
      %v345 = vadd.f32 0.0, %v344
      %v346 = vpop.f32.mrb[0].mxu0
      %v347 = vpop.f32.mrb[0].mxu0
      %v348 = vadd.f32 0.0, %v347
      %v349 = vpop.f32.mrb[0].mxu0
      %350 = vmatprep.mubr.bf16.mxu0 0
      %351 = vmatmul.mubr.bf16.gmra.mrb[0].mxu0 %v299
      %v352 = vpop.f32.mrb[0].mxu0
      %v353 = vadd.f32 0.0, %v352
      %v354 = vpop.f32.mrb[0].mxu0
      %v355 = vpop.f32.mrb[0].mxu0
      %v356 = vadd.f32 0.0, %v355
      %v357 = vpop.f32.mrb[0].mxu0
      %358 = vmatprep.mubr.bf16.mxu0 0
      %359 = vmatmul.mubr.bf16.gmra.mrb[0].mxu0 %v302
      %v360 = vpop.f32.mrb[0].mxu0
      %v361 = vadd.f32 0.0, %v360
      %v362 = vpop.f32.mrb[0].mxu0
      %v363 = vpop.f32.mrb[0].mxu0
      %v364 = vadd.f32 0.0, %v363
      %v365 = vpop.f32.mrb[0].mxu0
      %366 = vmatprep.mubr.bf16.mxu0 0
      %367 = vmatmul.mubr.bf16.gmra.mrb[0].mxu0 %v305
      %v368 = vpop.f32.mrb[0].mxu0
      %v369 = vadd.f32 0.0, %v368
      %v370 = vpop.f32.mrb[0].mxu0
      %v371 = vpop.f32.mrb[0].mxu0
      %v372 = vadd.f32 0.0, %v371
      %v373 = vpop.f32.mrb[0].mxu0
      %374 = vmatprep.mubr.bf16.mxu0 0
      %375 = vmatmul.mubr.bf16.gmra.mrb[0].mxu0 %v308
      %v376 = vpop.f32.mrb[0].mxu0
      %v377 = vadd.f32 0.0, %v376
      %v378 = vpop.f32.mrb[0].mxu0
      %v379 = vpop.f32.mrb[0].mxu0
      %v380 = vadd.f32 0.0, %v379
      %v381 = vpop.f32.mrb[0].mxu0
      %382 = vdwg.mxu0
      %v383 = vadd.f32 %v253, %v345
      %v384 = vadd.f32 %v254, %v348
      %v385 = vadd.f32 %v255, %v353
      %v386 = vadd.f32 %v256, %v356
      %v387 = vadd.f32 %v257, %v361
      %v388 = vadd.f32 %v258, %v364
      %v389 = vadd.f32 %v259, %v369
      %v390 = vadd.f32 %v260, %v372
      %v391 = vadd.f32 %v261, %v377
      %v392 = vadd.f32 %v262, %v380
      %393 = vst.msk [vmem:[#allocation2] sm:$0xff] %vm230, %v383
      %394 = vst.msk [vmem:[#allocation2 + $0x8] sm:$0xff] %vm230, %v384
      %395 = vst.msk [vmem:[#allocation2 + $0x10] sm:$0xff] %vm230, %v385
      %396 = vst.msk [vmem:[#allocation2 + $0x18] sm:$0xff] %vm230, %v386
      %397 = vst.msk [vmem:[#allocation2 + $0x20] sm:$0xff] %vm230, %v387
      %398 = vst.msk [vmem:[#allocation2 + $0x28] sm:$0xff] %vm230, %v388
      %399 = vst.msk [vmem:[#allocation2 + $0x30] sm:$0xff] %vm230, %v389
      %400 = vst.msk [vmem:[#allocation2 + $0x38] sm:$0xff] %vm230, %v390
      %401 = vst.msk [vmem:[#allocation2 + $0x40] sm:$0xff] %vm230, %v391
      %402 = vst.msk [vmem:[#allocation2 + $0x48] sm:$0xff] %vm230, %v392
      %v403 = vld [vmem:[%s206] sm:$0xf]
      %v404 = vld [vmem:[%s206 + $0x4] sm:$0xf]
      %v405 = vld [vmem:[%s206 + $0x8] sm:$0xf]
      %v406 = vld [vmem:[%s206 + $0xc] sm:$0xf]
      %v407 = vld [vmem:[%s206 + $0x10] sm:$0xf]
      %v408 = vld [vmem:[%s206 + $0x14] sm:$0xf]
      %v409 = vld [vmem:[%s206 + $0x18] sm:$0xf]
      %v410 = vld [vmem:[%s206 + $0x1c] sm:$0xf]
      %v411 = vld [vmem:[%s206 + $0x20] sm:$0xf]
      %v412 = vld [vmem:[%s206 + $0x24] sm:$0xf]
      %v413 = vld [vmem:[%s206 + $0x28] sm:$0x1]
      %v414 = vld [vmem:[%s210 + $0x8] sm:$0xf]
      %v415 = vld [vmem:[%s210 + $0xc] sm:$0xf]
      %v416 = vld [vmem:[#allocation2] sm:$0xff]
      %v417 = vld [vmem:[#allocation2 + $0x8] sm:$0xff]
      %v418 = vld [vmem:[#allocation2 + $0x10] sm:$0xff]
      %v419 = vld [vmem:[#allocation2 + $0x18] sm:$0xff]
      %v420 = vld [vmem:[#allocation2 + $0x20] sm:$0xff]
      %v421 = vld [vmem:[#allocation2 + $0x28] sm:$0xff]
      %v422 = vld [vmem:[#allocation2 + $0x30] sm:$0xff]
      %v423 = vld [vmem:[#allocation2 + $0x38] sm:$0xff]
      %v424 = vld [vmem:[#allocation2 + $0x40] sm:$0xff]
      %v425 = vld [vmem:[#allocation2 + $0x48] sm:$0xff]
      %v437 = vunpack.c.l.b16 %v403
      %v438 = vunpack.c.l.b16 %v404
      %v439 = vunpack.c.l.b16 %v405
      %v440 = vunpack.c.l.b16 %v406
      %v441 = vunpack.c.l.b16 %v407
      %v442 = vunpack.c.l.b16 %v408
      %v443 = vunpack.c.l.b16 %v409
      %v444 = vunpack.c.l.b16 %v410
      %v445 = vunpack.c.l.b16 %v411
      %v446 = vunpack.c.l.b16 %v412
      %v447 = vunpack.c.l.b16 %v413
      %v448 = vpack.c.b16 %v438, %v437
      %v449 = vpack.c.b16 %v440, %v439
      %v450 = vpack.c.b16 %v442, %v441
      %v451 = vpack.c.b16 %v444, %v443
      %v452 = vpack.c.b16 %v446, %v445
      %v453 = vpack.c.b16 %v447, %v447
      %vm454 = vsmask.f32 7424
      %v456 = vshrl.u32 %v448, 16
      %v458 = vshll.u32 %v448, 16
      %v460 = vrot.slane %v458, 1
      %v461 = vor.u32 %v456, %v460
      %v463 = vshll.u32 %v449, 16
      %v465 = vrot.slane %v463, 1
      %v466 = vsel %vm454, %v461, %v465
      %v467 = vshrl.u32 %v449, 16
      %v469 = vor.u32 %v467, %v465
      %v471 = vshll.u32 %v450, 16
      %v473 = vrot.slane %v471, 1
      %v474 = vsel %vm454, %v469, %v473
      %v475 = vshrl.u32 %v450, 16
      %v477 = vor.u32 %v475, %v473
      %v479 = vshll.u32 %v451, 16
      %v481 = vrot.slane %v479, 1
      %v482 = vsel %vm454, %v477, %v481
      %v483 = vshrl.u32 %v451, 16
      %v485 = vor.u32 %v483, %v481
      %v487 = vshll.u32 %v452, 16
      %v489 = vrot.slane %v487, 1
      %v490 = vsel %vm454, %v485, %v489
      %v491 = vshrl.u32 %v452, 16
      %v493 = vor.u32 %v491, %v489
      %v495 = vshll.u32 %v453, 16
      %v497 = vrot.slane %v495, 1
      %v498 = vsel %vm454, %v493, %v497
      %v501 = vunpack.c.l.b16 %v414
      %v502 = vunpack.c.l.b16 %v415
      %v503 = vpack.c.b16 %v502, %v501
      %v506 = vsel %vm294, %v466, 0
      %v509 = vsel %vm294, %v474, 0
      %v512 = vsel %vm294, %v482, 0
      %v515 = vsel %vm294, %v490, 0
      %v518 = vsel %vm294, %v498, 0
      %520 = vmatprep.subr.bf16.mxu0 0
      %521 = vmatpush1.bf16.msra.mxu0 %v503
      %522 = vmatprep.subr.bf16.mxu0 0
      %523 = vmatpush1.bf16.msra.mxu0 0
      %524 = vmatprep.subr.bf16.mxu0 0
      %525 = vmatpush1.bf16.msra.mxu0 0
      %526 = vmatprep.subr.bf16.mxu0 0
      %527 = vmatpush1.bf16.msra.mxu0 0
      %528 = vmatprep.subr.bf16.mxu0 0
      %529 = vmatpush1.bf16.msra.mxu0 0
      %530 = vmatprep.subr.bf16.mxu0 0
      %531 = vmatpush1.bf16.msra.mxu0 0
      %532 = vmatprep.subr.bf16.mxu0 0
      %533 = vmatpush1.bf16.msra.mxu0 0
      %534 = vmatprep.subr.bf16.mxu0 0
      %535 = vmatpush1.bf16.msra.mxu0 0
      %536 = vmatprep.subr.bf16.mxu0 0
      %537 = vmatpush1.bf16.msra.mxu0 0
      %538 = vmatprep.subr.bf16.mxu0 0
      %539 = vmatpush1.bf16.msra.mxu0 0
      %540 = vmatprep.subr.bf16.mxu0 0
      %541 = vmatpush1.bf16.msra.mxu0 0
      %542 = vmatprep.subr.bf16.mxu0 0
      %543 = vmatpush1.bf16.msra.mxu0 0
      %544 = vmatprep.subr.bf16.mxu0 0
      %545 = vmatpush1.bf16.msra.mxu0 0
      %546 = vmatprep.subr.bf16.mxu0 0
      %547 = vmatpush1.bf16.msra.mxu0 0
      %548 = vmatprep.subr.bf16.mxu0 0
      %549 = vmatpush1.bf16.msra.mxu0 0
      %550 = vmatprep.subr.bf16.mxu0 0
      %551 = vmatpush1.bf16.msra.mxu0 0
      %552 = vmatprep.mubr.bf16.mxu0 0
      %553 = vmatmul.mubr.bf16.gmra.mrb[0].mxu0 %v506
      %v554 = vpop.f32.mrb[0].mxu0
      %v555 = vadd.f32 0.0, %v554
      %v556 = vpop.f32.mrb[0].mxu0
      %v557 = vpop.f32.mrb[0].mxu0
      %v558 = vadd.f32 0.0, %v557
      %v559 = vpop.f32.mrb[0].mxu0
      %560 = vmatprep.mubr.bf16.mxu0 0
      %561 = vmatmul.mubr.bf16.gmra.mrb[0].mxu0 %v509
      %v562 = vpop.f32.mrb[0].mxu0
      %v563 = vadd.f32 0.0, %v562
      %v564 = vpop.f32.mrb[0].mxu0
      %v565 = vpop.f32.mrb[0].mxu0
      %v566 = vadd.f32 0.0, %v565
      %v567 = vpop.f32.mrb[0].mxu0
      %568 = vmatprep.mubr.bf16.mxu0 0
      %569 = vmatmul.mubr.bf16.gmra.mrb[0].mxu0 %v512
      %v570 = vpop.f32.mrb[0].mxu0
      %v571 = vadd.f32 0.0, %v570
      %v572 = vpop.f32.mrb[0].mxu0
      %v573 = vpop.f32.mrb[0].mxu0
      %v574 = vadd.f32 0.0, %v573
      %v575 = vpop.f32.mrb[0].mxu0
      %576 = vmatprep.mubr.bf16.mxu0 0
      %577 = vmatmul.mubr.bf16.gmra.mrb[0].mxu0 %v515
      %v578 = vpop.f32.mrb[0].mxu0
      %v579 = vadd.f32 0.0, %v578
      %v580 = vpop.f32.mrb[0].mxu0
      %v581 = vpop.f32.mrb[0].mxu0
      %v582 = vadd.f32 0.0, %v581
      %v583 = vpop.f32.mrb[0].mxu0
      %584 = vmatprep.mubr.bf16.mxu0 0
      %585 = vmatmul.mubr.bf16.gmra.mrb[0].mxu0 %v518
      %v586 = vpop.f32.mrb[0].mxu0
      %v587 = vadd.f32 0.0, %v586
      %v588 = vpop.f32.mrb[0].mxu0
      %v589 = vpop.f32.mrb[0].mxu0
      %v590 = vadd.f32 0.0, %v589
      %v591 = vpop.f32.mrb[0].mxu0
      %592 = vdwg.mxu0
      %v593 = vadd.f32 %v416, %v555
      %v594 = vadd.f32 %v417, %v558
      %v595 = vadd.f32 %v418, %v563
      %v596 = vadd.f32 %v419, %v566
      %v597 = vadd.f32 %v420, %v571
      %v598 = vadd.f32 %v421, %v574
      %v599 = vadd.f32 %v422, %v579
      %v600 = vadd.f32 %v423, %v582
      %v601 = vadd.f32 %v424, %v587
      %v602 = vadd.f32 %v425, %v590
      %603 = vst.msk [vmem:[#allocation2] sm:$0xff] %vm230, %v593
      %604 = vst.msk [vmem:[#allocation2 + $0x8] sm:$0xff] %vm230, %v594
      %605 = vst.msk [vmem:[#allocation2 + $0x10] sm:$0xff] %vm230, %v595
      %606 = vst.msk [vmem:[#allocation2 + $0x18] sm:$0xff] %vm230, %v596
      %607 = vst.msk [vmem:[#allocation2 + $0x20] sm:$0xff] %vm230, %v597
      %608 = vst.msk [vmem:[#allocation2 + $0x28] sm:$0xff] %vm230, %v598
      %609 = vst.msk [vmem:[#allocation2 + $0x30] sm:$0xff] %vm230, %v599
      %610 = vst.msk [vmem:[#allocation2 + $0x38] sm:$0xff] %vm230, %v600
      %611 = vst.msk [vmem:[#allocation2 + $0x40] sm:$0xff] %vm230, %v601
      %612 = vst.msk [vmem:[#allocation2 + $0x48] sm:$0xff] %vm230, %v602
      %v613 = vld [vmem:[%s206] sm:$0xe]
      %v614 = vld [vmem:[%s206 + $0x4] sm:$0xf]
      %v615 = vld [vmem:[%s206 + $0x8] sm:$0xf]
      %v616 = vld [vmem:[%s206 + $0xc] sm:$0xf]
      %v617 = vld [vmem:[%s206 + $0x10] sm:$0xf]
      %v618 = vld [vmem:[%s206 + $0x14] sm:$0xf]
      %v619 = vld [vmem:[%s206 + $0x18] sm:$0xf]
      %v620 = vld [vmem:[%s206 + $0x1c] sm:$0xf]
      %v621 = vld [vmem:[%s206 + $0x20] sm:$0xf]
      %v622 = vld [vmem:[%s206 + $0x24] sm:$0xf]
      %v623 = vld [vmem:[%s206 + $0x28] sm:$0x1]
      %v624 = vld [vmem:[%s210 + $0x10] sm:$0xf]
      %v625 = vld [vmem:[%s210 + $0x14] sm:$0xf]
      %v626 = vld [vmem:[#allocation2] sm:$0xff]
      %v627 = vld [vmem:[#allocation2 + $0x8] sm:$0xff]
      %v628 = vld [vmem:[#allocation2 + $0x10] sm:$0xff]
      %v629 = vld [vmem:[#allocation2 + $0x18] sm:$0xff]
      %v630 = vld [vmem:[#allocation2 + $0x20] sm:$0xff]
      %v631 = vld [vmem:[#allocation2 + $0x28] sm:$0xff]
      %v632 = vld [vmem:[#allocation2 + $0x30] sm:$0xff]
      %v633 = vld [vmem:[#allocation2 + $0x38] sm:$0xff]
      %v634 = vld [vmem:[#allocation2 + $0x40] sm:$0xff]
      %v635 = vld [vmem:[#allocation2 + $0x48] sm:$0xff]
      %v647 = vunpack.c.l.b16 %v613
      %v648 = vunpack.c.l.b16 %v614
      %v649 = vunpack.c.l.b16 %v615
      %v650 = vunpack.c.l.b16 %v616
      %v651 = vunpack.c.l.b16 %v617
      %v652 = vunpack.c.l.b16 %v618
      %v653 = vunpack.c.l.b16 %v619
      %v654 = vunpack.c.l.b16 %v620
      %v655 = vunpack.c.l.b16 %v621
      %v656 = vunpack.c.l.b16 %v622
      %v657 = vunpack.c.l.b16 %v623
      %v658 = vpack.c.b16 %v648, %v647
      %v659 = vpack.c.b16 %v650, %v649
      %v660 = vpack.c.b16 %v652, %v651
      %v661 = vpack.c.b16 %v654, %v653
      %v662 = vpack.c.b16 %v656, %v655
      %v663 = vpack.c.b16 %v657, %v657
      %vm664 = vcmask 1046528
      %v665 = vrot.slane %v658, 1
      %v666 = vrot.slane %v659, 1
      %v667 = vsel %vm664, %v665, %v666
      %v668 = vrot.slane %v660, 1
      %v669 = vsel %vm664, %v666, %v668
      %v670 = vrot.slane %v661, 1
      %v671 = vsel %vm664, %v668, %v670
      %v672 = vrot.slane %v662, 1
      %v673 = vsel %vm664, %v670, %v672
      %v674 = vrot.slane %v663, 1
      %v675 = vsel %vm664, %v672, %v674
      %v678 = vunpack.c.l.b16 %v624
      %v679 = vunpack.c.l.b16 %v625
      %v680 = vpack.c.b16 %v679, %v678
      %v683 = vsel %vm294, %v667, 0
      %v686 = vsel %vm294, %v669, 0
      %v689 = vsel %vm294, %v671, 0
      %v692 = vsel %vm294, %v673, 0
      %v695 = vsel %vm294, %v675, 0
      %697 = vmatprep.subr.bf16.mxu0 0
      %698 = vmatpush1.bf16.msra.mxu0 %v680
      %699 = vmatprep.subr.bf16.mxu0 0
      %700 = vmatpush1.bf16.msra.mxu0 0
      %701 = vmatprep.subr.bf16.mxu0 0
      %702 = vmatpush1.bf16.msra.mxu0 0
      %703 = vmatprep.subr.bf16.mxu0 0
      %704 = vmatpush1.bf16.msra.mxu0 0
      %705 = vmatprep.subr.bf16.mxu0 0
      %706 = vmatpush1.bf16.msra.mxu0 0
      %707 = vmatprep.subr.bf16.mxu0 0
      %708 = vmatpush1.bf16.msra.mxu0 0
      %709 = vmatprep.subr.bf16.mxu0 0
      %710 = vmatpush1.bf16.msra.mxu0 0
      %711 = vmatprep.subr.bf16.mxu0 0
      %712 = vmatpush1.bf16.msra.mxu0 0
      %713 = vmatprep.subr.bf16.mxu0 0
      %714 = vmatpush1.bf16.msra.mxu0 0
      %715 = vmatprep.subr.bf16.mxu0 0
      %716 = vmatpush1.bf16.msra.mxu0 0
      %717 = vmatprep.subr.bf16.mxu0 0
      %718 = vmatpush1.bf16.msra.mxu0 0
      %719 = vmatprep.subr.bf16.mxu0 0
      %720 = vmatpush1.bf16.msra.mxu0 0
      %721 = vmatprep.subr.bf16.mxu0 0
      %722 = vmatpush1.bf16.msra.mxu0 0
      %723 = vmatprep.subr.bf16.mxu0 0
      %724 = vmatpush1.bf16.msra.mxu0 0
      %725 = vmatprep.subr.bf16.mxu0 0
      %726 = vmatpush1.bf16.msra.mxu0 0
      %727 = vmatprep.subr.bf16.mxu0 0
      %728 = vmatpush1.bf16.msra.mxu0 0
      %729 = vmatprep.mubr.bf16.mxu0 0
      %730 = vmatmul.mubr.bf16.gmra.mrb[0].mxu0 %v683
      %v731 = vpop.f32.mrb[0].mxu0
      %v732 = vadd.f32 0.0, %v731
      %v733 = vpop.f32.mrb[0].mxu0
      %v734 = vpop.f32.mrb[0].mxu0
      %v735 = vadd.f32 0.0, %v734
      %v736 = vpop.f32.mrb[0].mxu0
      %737 = vmatprep.mubr.bf16.mxu0 0
      %738 = vmatmul.mubr.bf16.gmra.mrb[0].mxu0 %v686
      %v739 = vpop.f32.mrb[0].mxu0
      %v740 = vadd.f32 0.0, %v739
      %v741 = vpop.f32.mrb[0].mxu0
      %v742 = vpop.f32.mrb[0].mxu0
      %v743 = vadd.f32 0.0, %v742
      %v744 = vpop.f32.mrb[0].mxu0
      %745 = vmatprep.mubr.bf16.mxu0 0
      %746 = vmatmul.mubr.bf16.gmra.mrb[0].mxu0 %v689
      %v747 = vpop.f32.mrb[0].mxu0
      %v748 = vadd.f32 0.0, %v747
      %v749 = vpop.f32.mrb[0].mxu0
      %v750 = vpop.f32.mrb[0].mxu0
      %v751 = vadd.f32 0.0, %v750
      %v752 = vpop.f32.mrb[0].mxu0
      %753 = vmatprep.mubr.bf16.mxu0 0
      %754 = vmatmul.mubr.bf16.gmra.mrb[0].mxu0 %v692
      %v755 = vpop.f32.mrb[0].mxu0
      %v756 = vadd.f32 0.0, %v755
      %v757 = vpop.f32.mrb[0].mxu0
      %v758 = vpop.f32.mrb[0].mxu0
      %v759 = vadd.f32 0.0, %v758
      %v760 = vpop.f32.mrb[0].mxu0
      %761 = vmatprep.mubr.bf16.mxu0 0
      %762 = vmatmul.mubr.bf16.gmra.mrb[0].mxu0 %v695
      %v763 = vpop.f32.mrb[0].mxu0
      %v764 = vadd.f32 0.0, %v763
      %v765 = vpop.f32.mrb[0].mxu0
      %v766 = vpop.f32.mrb[0].mxu0
      %v767 = vadd.f32 0.0, %v766
      %v768 = vpop.f32.mrb[0].mxu0
      %769 = vdwg.mxu0
      %v770 = vadd.f32 %v626, %v732
      %v771 = vadd.f32 %v627, %v735
      %v772 = vadd.f32 %v628, %v740
      %v773 = vadd.f32 %v629, %v743
      %v774 = vadd.f32 %v630, %v748
      %v775 = vadd.f32 %v631, %v751
      %v776 = vadd.f32 %v632, %v756
      %v777 = vadd.f32 %v633, %v759
      %v778 = vadd.f32 %v634, %v764
      %v779 = vadd.f32 %v635, %v767
      %780 = vst.msk [vmem:[#allocation2] sm:$0xff] %vm230, %v770
      %781 = vst.msk [vmem:[#allocation2 + $0x8] sm:$0xff] %vm230, %v771
      %782 = vst.msk [vmem:[#allocation2 + $0x10] sm:$0xff] %vm230, %v772
      %783 = vst.msk [vmem:[#allocation2 + $0x18] sm:$0xff] %vm230, %v773
      %784 = vst.msk [vmem:[#allocation2 + $0x20] sm:$0xff] %vm230, %v774
      %785 = vst.msk [vmem:[#allocation2 + $0x28] sm:$0xff] %vm230, %v775
      %786 = vst.msk [vmem:[#allocation2 + $0x30] sm:$0xff] %vm230, %v776
      %787 = vst.msk [vmem:[#allocation2 + $0x38] sm:$0xff] %vm230, %v777
      %788 = vst.msk [vmem:[#allocation2 + $0x40] sm:$0xff] %vm230, %v778
      %789 = vst.msk [vmem:[#allocation2 + $0x48] sm:$0xff] %vm230, %v779
      %v790 = vld [vmem:[%s206 + $0x4] sm:$0xe]
      %v791 = vld [vmem:[%s206 + $0x8] sm:$0xf]
      %v792 = vld [vmem:[%s206 + $0xc] sm:$0xf]
      %v793 = vld [vmem:[%s206 + $0x10] sm:$0xf]
      %v794 = vld [vmem:[%s206 + $0x14] sm:$0xf]
      %v795 = vld [vmem:[%s206 + $0x18] sm:$0xf]
      %v796 = vld [vmem:[%s206 + $0x1c] sm:$0xf]
      %v797 = vld [vmem:[%s206 + $0x20] sm:$0xf]
      %v798 = vld [vmem:[%s206 + $0x24] sm:$0xf]
      %v799 = vld [vmem:[%s206 + $0x28] sm:$0xf]
      %v800 = vld [vmem:[%s206 + $0x2c] sm:$0x1]
      %v801 = vld [vmem:[%s210 + $0x18] sm:$0xf]
      %v802 = vld [vmem:[%s210 + $0x1c] sm:$0xf]
      %v803 = vld [vmem:[#allocation2] sm:$0xff]
      %v804 = vld [vmem:[#allocation2 + $0x8] sm:$0xff]
      %v805 = vld [vmem:[#allocation2 + $0x10] sm:$0xff]
      %v806 = vld [vmem:[#allocation2 + $0x18] sm:$0xff]
      %v807 = vld [vmem:[#allocation2 + $0x20] sm:$0xff]
      %v808 = vld [vmem:[#allocation2 + $0x28] sm:$0xff]
      %v809 = vld [vmem:[#allocation2 + $0x30] sm:$0xff]
      %v810 = vld [vmem:[#allocation2 + $0x38] sm:$0xff]
      %v811 = vld [vmem:[#allocation2 + $0x40] sm:$0xff]
      %v812 = vld [vmem:[#allocation2 + $0x48] sm:$0xff]
      %v824 = vunpack.c.l.b16 %v790
      %v825 = vunpack.c.l.b16 %v791
      %v826 = vunpack.c.l.b16 %v792
      %v827 = vunpack.c.l.b16 %v793
      %v828 = vunpack.c.l.b16 %v794
      %v829 = vunpack.c.l.b16 %v795
      %v830 = vunpack.c.l.b16 %v796
      %v831 = vunpack.c.l.b16 %v797
      %v832 = vunpack.c.l.b16 %v798
      %v833 = vunpack.c.l.b16 %v799
      %v834 = vunpack.c.l.b16 %v800
      %v835 = vpack.c.b16 %v825, %v824
      %v836 = vpack.c.b16 %v827, %v826
      %v837 = vpack.c.b16 %v829, %v828
      %v838 = vpack.c.b16 %v831, %v830
      %v839 = vpack.c.b16 %v833, %v832
      %v840 = vpack.c.b16 %v834, %v834
      %v841 = vrot.slane %v835, 1
      %v842 = vrot.slane %v836, 1
      %v843 = vsel %vm664, %v841, %v842
      %v844 = vrot.slane %v837, 1
      %v845 = vsel %vm664, %v842, %v844
      %v846 = vrot.slane %v838, 1
      %v847 = vsel %vm664, %v844, %v846
      %v848 = vrot.slane %v839, 1
      %v849 = vsel %vm664, %v846, %v848
      %v850 = vrot.slane %v840, 1
      %v851 = vsel %vm664, %v848, %v850
      %v854 = vunpack.c.l.b16 %v801
      %v855 = vunpack.c.l.b16 %v802
      %v856 = vpack.c.b16 %v855, %v854
      %v859 = vsel %vm294, %v843, 0
      %v862 = vsel %vm294, %v845, 0
      %v865 = vsel %vm294, %v847, 0
      %v868 = vsel %vm294, %v849, 0
      %v871 = vsel %vm294, %v851, 0
      %873 = vmatprep.subr.bf16.mxu0 0
      %874 = vmatpush1.bf16.msra.mxu0 %v856
      %875 = vmatprep.subr.bf16.mxu0 0
      %876 = vmatpush1.bf16.msra.mxu0 0
      %877 = vmatprep.subr.bf16.mxu0 0
      %878 = vmatpush1.bf16.msra.mxu0 0
      %879 = vmatprep.subr.bf16.mxu0 0
      %880 = vmatpush1.bf16.msra.mxu0 0
      %881 = vmatprep.subr.bf16.mxu0 0
      %882 = vmatpush1.bf16.msra.mxu0 0
      %883 = vmatprep.subr.bf16.mxu0 0
      %884 = vmatpush1.bf16.msra.mxu0 0
      %885 = vmatprep.subr.bf16.mxu0 0
      %886 = vmatpush1.bf16.msra.mxu0 0
      %887 = vmatprep.subr.bf16.mxu0 0
      %888 = vmatpush1.bf16.msra.mxu0 0
      %889 = vmatprep.subr.bf16.mxu0 0
      %890 = vmatpush1.bf16.msra.mxu0 0
      %891 = vmatprep.subr.bf16.mxu0 0
      %892 = vmatpush1.bf16.msra.mxu0 0
      %893 = vmatprep.subr.bf16.mxu0 0
      %894 = vmatpush1.bf16.msra.mxu0 0
      %895 = vmatprep.subr.bf16.mxu0 0
      %896 = vmatpush1.bf16.msra.mxu0 0
      %897 = vmatprep.subr.bf16.mxu0 0
      %898 = vmatpush1.bf16.msra.mxu0 0
      %899 = vmatprep.subr.bf16.mxu0 0
      %900 = vmatpush1.bf16.msra.mxu0 0
      %901 = vmatprep.subr.bf16.mxu0 0
      %902 = vmatpush1.bf16.msra.mxu0 0
      %903 = vmatprep.subr.bf16.mxu0 0
      %904 = vmatpush1.bf16.msra.mxu0 0
      %905 = vmatprep.mubr.bf16.mxu0 0
      %906 = vmatmul.mubr.bf16.gmra.mrb[0].mxu0 %v859
      %v907 = vpop.f32.mrb[0].mxu0
      %v908 = vadd.f32 0.0, %v907
      %v909 = vpop.f32.mrb[0].mxu0
      %v910 = vpop.f32.mrb[0].mxu0
      %v911 = vadd.f32 0.0, %v910
      %v912 = vpop.f32.mrb[0].mxu0
      %913 = vmatprep.mubr.bf16.mxu0 0
      %914 = vmatmul.mubr.bf16.gmra.mrb[0].mxu0 %v862
      %v915 = vpop.f32.mrb[0].mxu0
      %v916 = vadd.f32 0.0, %v915
      %v917 = vpop.f32.mrb[0].mxu0
      %v918 = vpop.f32.mrb[0].mxu0
      %v919 = vadd.f32 0.0, %v918
      %v920 = vpop.f32.mrb[0].mxu0
      %921 = vmatprep.mubr.bf16.mxu0 0
      %922 = vmatmul.mubr.bf16.gmra.mrb[0].mxu0 %v865
      %v923 = vpop.f32.mrb[0].mxu0
      %v924 = vadd.f32 0.0, %v923
      %v925 = vpop.f32.mrb[0].mxu0
      %v926 = vpop.f32.mrb[0].mxu0
      %v927 = vadd.f32 0.0, %v926
      %v928 = vpop.f32.mrb[0].mxu0
      %929 = vmatprep.mubr.bf16.mxu0 0
      %930 = vmatmul.mubr.bf16.gmra.mrb[0].mxu0 %v868
      %v931 = vpop.f32.mrb[0].mxu0
      %v932 = vadd.f32 0.0, %v931
      %v933 = vpop.f32.mrb[0].mxu0
      %v934 = vpop.f32.mrb[0].mxu0
      %v935 = vadd.f32 0.0, %v934
      %v936 = vpop.f32.mrb[0].mxu0
      %937 = vmatprep.mubr.bf16.mxu0 0
      %938 = vmatmul.mubr.bf16.gmra.mrb[0].mxu0 %v871
      %v939 = vpop.f32.mrb[0].mxu0
      %v940 = vadd.f32 0.0, %v939
      %v941 = vpop.f32.mrb[0].mxu0
      %v942 = vpop.f32.mrb[0].mxu0
      %v943 = vadd.f32 0.0, %v942
      %v944 = vpop.f32.mrb[0].mxu0
      %945 = vdwg.mxu0
      %v946 = vadd.f32 %v803, %v908
      %v947 = vadd.f32 %v804, %v911
      %v948 = vadd.f32 %v805, %v916
      %v949 = vadd.f32 %v806, %v919
      %v950 = vadd.f32 %v807, %v924
      %v951 = vadd.f32 %v808, %v927
      %v952 = vadd.f32 %v809, %v932
      %v953 = vadd.f32 %v810, %v935
      %v954 = vadd.f32 %v811, %v940
      %v955 = vadd.f32 %v812, %v943
      %956 = vst.msk [vmem:[#allocation2] sm:$0xff] %vm230, %v946
      %957 = vst.msk [vmem:[#allocation2 + $0x8] sm:$0xff] %vm230, %v947
      %958 = vst.msk [vmem:[#allocation2 + $0x10] sm:$0xff] %vm230, %v948
      %959 = vst.msk [vmem:[#allocation2 + $0x18] sm:$0xff] %vm230, %v949
      %960 = vst.msk [vmem:[#allocation2 + $0x20] sm:$0xff] %vm230, %v950
      %961 = vst.msk [vmem:[#allocation2 + $0x28] sm:$0xff] %vm230, %v951
      %962 = vst.msk [vmem:[#allocation2 + $0x30] sm:$0xff] %vm230, %v952
      %963 = vst.msk [vmem:[#allocation2 + $0x38] sm:$0xff] %vm230, %v953
      %964 = vst.msk [vmem:[#allocation2 + $0x40] sm:$0xff] %vm230, %v954
      %965 = vst.msk [vmem:[#allocation2 + $0x48] sm:$0xff] %vm230, %v955
      %v966 = vld [vmem:[%s206 + $0x4] sm:$0xe]
      %v967 = vld [vmem:[%s206 + $0x8] sm:$0xf]
      %v968 = vld [vmem:[%s206 + $0xc] sm:$0xf]
      %v969 = vld [vmem:[%s206 + $0x10] sm:$0xf]
      %v970 = vld [vmem:[%s206 + $0x14] sm:$0xf]
      %v971 = vld [vmem:[%s206 + $0x18] sm:$0xf]
      %v972 = vld [vmem:[%s206 + $0x1c] sm:$0xf]
      %v973 = vld [vmem:[%s206 + $0x20] sm:$0xf]
      %v974 = vld [vmem:[%s206 + $0x24] sm:$0xf]
      %v975 = vld [vmem:[%s206 + $0x28] sm:$0xf]
      %v976 = vld [vmem:[%s206 + $0x2c] sm:$0x3]
      %v977 = vld [vmem:[%s210 + $0x20] sm:$0xf]
      %v978 = vld [vmem:[%s210 + $0x24] sm:$0xf]
      %v979 = vld [vmem:[#allocation2] sm:$0xff]
      %v980 = vld [vmem:[#allocation2 + $0x8] sm:$0xff]
      %v981 = vld [vmem:[#allocation2 + $0x10] sm:$0xff]
      %v982 = vld [vmem:[#allocation2 + $0x18] sm:$0xff]
      %v983 = vld [vmem:[#allocation2 + $0x20] sm:$0xff]
      %v984 = vld [vmem:[#allocation2 + $0x28] sm:$0xff]
      %v985 = vld [vmem:[#allocation2 + $0x30] sm:$0xff]
      %v986 = vld [vmem:[#allocation2 + $0x38] sm:$0xff]
      %v987 = vld [vmem:[#allocation2 + $0x40] sm:$0xff]
      %v988 = vld [vmem:[#allocation2 + $0x48] sm:$0xff]
      %v1000 = vunpack.c.l.b16 %v966
      %v1001 = vunpack.c.l.b16 %v967
      %v1002 = vunpack.c.l.b16 %v968
      %v1003 = vunpack.c.l.b16 %v969
      %v1004 = vunpack.c.l.b16 %v970
      %v1005 = vunpack.c.l.b16 %v971
      %v1006 = vunpack.c.l.b16 %v972
      %v1007 = vunpack.c.l.b16 %v973
      %v1008 = vunpack.c.l.b16 %v974
      %v1009 = vunpack.c.l.b16 %v975
      %v1010 = vunpack.c.l.b16 %v976
      %v1011 = vpack.c.b16 %v1001, %v1000
      %v1012 = vpack.c.b16 %v1003, %v1002
      %v1013 = vpack.c.b16 %v1005, %v1004
      %v1014 = vpack.c.b16 %v1007, %v1006
      %v1015 = vpack.c.b16 %v1009, %v1008
      %v1016 = vpack.c.b16 %v1010, %v1010
      %vm1017 = vsmask.f32 6400
      %v1019 = vshrl.u32 %v1011, 16
      %v1021 = vrot.slane %v1019, 1
      %v1022 = vshll.u32 %v1011, 16
      %v1024 = vrot.slane %v1022, 2
      %v1025 = vor.u32 %v1021, %v1024
      %v1027 = vshrl.u32 %v1012, 16
      %v1029 = vrot.slane %v1027, 1
      %v1030 = vshll.u32 %v1012, 16
      %v1032 = vrot.slane %v1030, 2
      %v1033 = vor.u32 %v1029, %v1032
      %v1034 = vsel %vm1017, %v1025, %v1033
      %v1036 = vshrl.u32 %v1013, 16
      %v1038 = vrot.slane %v1036, 1
      %v1039 = vshll.u32 %v1013, 16
      %v1041 = vrot.slane %v1039, 2
      %v1042 = vor.u32 %v1038, %v1041
      %v1043 = vsel %vm1017, %v1033, %v1042
      %v1045 = vshrl.u32 %v1014, 16
      %v1047 = vrot.slane %v1045, 1
      %v1048 = vshll.u32 %v1014, 16
      %v1050 = vrot.slane %v1048, 2
      %v1051 = vor.u32 %v1047, %v1050
      %v1052 = vsel %vm1017, %v1042, %v1051
      %v1054 = vshrl.u32 %v1015, 16
      %v1056 = vrot.slane %v1054, 1
      %v1057 = vshll.u32 %v1015, 16
      %v1059 = vrot.slane %v1057, 2
      %v1060 = vor.u32 %v1056, %v1059
      %v1061 = vsel %vm1017, %v1051, %v1060
      %v1063 = vshrl.u32 %v1016, 16
      %v1065 = vrot.slane %v1063, 1
      %v1066 = vshll.u32 %v1016, 16
      %v1068 = vrot.slane %v1066, 2
      %v1069 = vor.u32 %v1065, %v1068
      %v1070 = vsel %vm1017, %v1060, %v1069
      %v1073 = vunpack.c.l.b16 %v977
      %v1074 = vunpack.c.l.b16 %v978
      %v1075 = vpack.c.b16 %v1074, %v1073
      %v1078 = vsel %vm294, %v1034, 0
      %v1081 = vsel %vm294, %v1043, 0
      %v1084 = vsel %vm294, %v1052, 0
      %v1087 = vsel %vm294, %v1061, 0
      %v1090 = vsel %vm294, %v1070, 0
      %1092 = vmatprep.subr.bf16.mxu0 0
      %1093 = vmatpush1.bf16.msra.mxu0 %v1075
      %1094 = vmatprep.subr.bf16.mxu0 0
      %1095 = vmatpush1.bf16.msra.mxu0 0
      %1096 = vmatprep.subr.bf16.mxu0 0
      %1097 = vmatpush1.bf16.msra.mxu0 0
      %1098 = vmatprep.subr.bf16.mxu0 0
      %1099 = vmatpush1.bf16.msra.mxu0 0
      %1100 = vmatprep.subr.bf16.mxu0 0
      %1101 = vmatpush1.bf16.msra.mxu0 0
      %1102 = vmatprep.subr.bf16.mxu0 0
      %1103 = vmatpush1.bf16.msra.mxu0 0
      %1104 = vmatprep.subr.bf16.mxu0 0
      %1105 = vmatpush1.bf16.msra.mxu0 0
      %1106 = vmatprep.subr.bf16.mxu0 0
      %1107 = vmatpush1.bf16.msra.mxu0 0
      %1108 = vmatprep.subr.bf16.mxu0 0
      %1109 = vmatpush1.bf16.msra.mxu0 0
      %1110 = vmatprep.subr.bf16.mxu0 0
      %1111 = vmatpush1.bf16.msra.mxu0 0
      %1112 = vmatprep.subr.bf16.mxu0 0
      %1113 = vmatpush1.bf16.msra.mxu0 0
      %1114 = vmatprep.subr.bf16.mxu0 0
      %1115 = vmatpush1.bf16.msra.mxu0 0
      %1116 = vmatprep.subr.bf16.mxu0 0
      %1117 = vmatpush1.bf16.msra.mxu0 0
      %1118 = vmatprep.subr.bf16.mxu0 0
      %1119 = vmatpush1.bf16.msra.mxu0 0
      %1120 = vmatprep.subr.bf16.mxu0 0
      %1121 = vmatpush1.bf16.msra.mxu0 0
      %1122 = vmatprep.subr.bf16.mxu0 0
      %1123 = vmatpush1.bf16.msra.mxu0 0
      %1124 = vmatprep.mubr.bf16.mxu0 0
      %1125 = vmatmul.mubr.bf16.gmra.mrb[0].mxu0 %v1078
      %v1126 = vpop.f32.mrb[0].mxu0
      %v1127 = vadd.f32 0.0, %v1126
      %v1128 = vpop.f32.mrb[0].mxu0
      %v1129 = vpop.f32.mrb[0].mxu0
      %v1130 = vadd.f32 0.0, %v1129
      %v1131 = vpop.f32.mrb[0].mxu0
      %1132 = vmatprep.mubr.bf16.mxu0 0
      %1133 = vmatmul.mubr.bf16.gmra.mrb[0].mxu0 %v1081
      %v1134 = vpop.f32.mrb[0].mxu0
      %v1135 = vadd.f32 0.0, %v1134
      %v1136 = vpop.f32.mrb[0].mxu0
      %v1137 = vpop.f32.mrb[0].mxu0
      %v1138 = vadd.f32 0.0, %v1137
      %v1139 = vpop.f32.mrb[0].mxu0
      %1140 = vmatprep.mubr.bf16.mxu0 0
      %1141 = vmatmul.mubr.bf16.gmra.mrb[0].mxu0 %v1084
      %v1142 = vpop.f32.mrb[0].mxu0
      %v1143 = vadd.f32 0.0, %v1142
      %v1144 = vpop.f32.mrb[0].mxu0
      %v1145 = vpop.f32.mrb[0].mxu0
      %v1146 = vadd.f32 0.0, %v1145
      %v1147 = vpop.f32.mrb[0].mxu0
      %1148 = vmatprep.mubr.bf16.mxu0 0
      %1149 = vmatmul.mubr.bf16.gmra.mrb[0].mxu0 %v1087
      %v1150 = vpop.f32.mrb[0].mxu0
      %v1151 = vadd.f32 0.0, %v1150
      %v1152 = vpop.f32.mrb[0].mxu0
      %v1153 = vpop.f32.mrb[0].mxu0
      %v1154 = vadd.f32 0.0, %v1153
      %v1155 = vpop.f32.mrb[0].mxu0
      %1156 = vmatprep.mubr.bf16.mxu0 0
      %1157 = vmatmul.mubr.bf16.gmra.mrb[0].mxu0 %v1090
      %v1158 = vpop.f32.mrb[0].mxu0
      %v1159 = vadd.f32 0.0, %v1158
      %v1160 = vpop.f32.mrb[0].mxu0
      %v1161 = vpop.f32.mrb[0].mxu0
      %v1162 = vadd.f32 0.0, %v1161
      %v1163 = vpop.f32.mrb[0].mxu0
      %1164 = vdwg.mxu0
      %v1165 = vadd.f32 %v979, %v1127
      %v1166 = vadd.f32 %v980, %v1130
      %v1167 = vadd.f32 %v981, %v1135
      %v1168 = vadd.f32 %v982, %v1138
      %v1169 = vadd.f32 %v983, %v1143
      %v1170 = vadd.f32 %v984, %v1146
      %v1171 = vadd.f32 %v985, %v1151
      %v1172 = vadd.f32 %v986, %v1154
      %v1173 = vadd.f32 %v987, %v1159
      %v1174 = vadd.f32 %v988, %v1162
      %1175 = vst.msk [vmem:[#allocation2] sm:$0xff] %vm230, %v1165
      %1176 = vst.msk [vmem:[#allocation2 + $0x8] sm:$0xff] %vm230, %v1166
      %1177 = vst.msk [vmem:[#allocation2 + $0x10] sm:$0xff] %vm230, %v1167
      %1178 = vst.msk [vmem:[#allocation2 + $0x18] sm:$0xff] %vm230, %v1168
      %1179 = vst.msk [vmem:[#allocation2 + $0x20] sm:$0xff] %vm230, %v1169
      %1180 = vst.msk [vmem:[#allocation2 + $0x28] sm:$0xff] %vm230, %v1170
      %1181 = vst.msk [vmem:[#allocation2 + $0x30] sm:$0xff] %vm230, %v1171
      %1182 = vst.msk [vmem:[#allocation2 + $0x38] sm:$0xff] %vm230, %v1172
      %1183 = vst.msk [vmem:[#allocation2 + $0x40] sm:$0xff] %vm230, %v1173
      %1184 = vst.msk [vmem:[#allocation2 + $0x48] sm:$0xff] %vm230, %v1174
      %v1185 = vld [vmem:[%s206 + $0x4] sm:$0xc]
      %v1186 = vld [vmem:[%s206 + $0x8] sm:$0xf]
      %v1187 = vld [vmem:[%s206 + $0xc] sm:$0xf]
      %v1188 = vld [vmem:[%s206 + $0x10] sm:$0xf]
      %v1189 = vld [vmem:[%s206 + $0x14] sm:$0xf]
      %v1190 = vld [vmem:[%s206 + $0x18] sm:$0xf]
      %v1191 = vld [vmem:[%s206 + $0x1c] sm:$0xf]
      %v1192 = vld [vmem:[%s206 + $0x20] sm:$0xf]
      %v1193 = vld [vmem:[%s206 + $0x24] sm:$0xf]
      %v1194 = vld [vmem:[%s206 + $0x28] sm:$0xf]
      %v1195 = vld [vmem:[%s206 + $0x2c] sm:$0x3]
      %v1196 = vld [vmem:[%s210 + $0x28] sm:$0xf]
      %v1197 = vld [vmem:[%s210 + $0x2c] sm:$0xf]
      %v1198 = vld [vmem:[#allocation2] sm:$0xff]
      %v1199 = vld [vmem:[#allocation2 + $0x8] sm:$0xff]
      %v1200 = vld [vmem:[#allocation2 + $0x10] sm:$0xff]
      %v1201 = vld [vmem:[#allocation2 + $0x18] sm:$0xff]
      %v1202 = vld [vmem:[#allocation2 + $0x20] sm:$0xff]
      %v1203 = vld [vmem:[#allocation2 + $0x28] sm:$0xff]
      %v1204 = vld [vmem:[#allocation2 + $0x30] sm:$0xff]
      %v1205 = vld [vmem:[#allocation2 + $0x38] sm:$0xff]
      %v1206 = vld [vmem:[#allocation2 + $0x40] sm:$0xff]
      %v1207 = vld [vmem:[#allocation2 + $0x48] sm:$0xff]
      %v1219 = vunpack.c.l.b16 %v1185
      %v1220 = vunpack.c.l.b16 %v1186
      %v1221 = vunpack.c.l.b16 %v1187
      %v1222 = vunpack.c.l.b16 %v1188
      %v1223 = vunpack.c.l.b16 %v1189
      %v1224 = vunpack.c.l.b16 %v1190
      %v1225 = vunpack.c.l.b16 %v1191
      %v1226 = vunpack.c.l.b16 %v1192
      %v1227 = vunpack.c.l.b16 %v1193
      %v1228 = vunpack.c.l.b16 %v1194
      %v1229 = vunpack.c.l.b16 %v1195
      %v1230 = vpack.c.b16 %v1220, %v1219
      %v1231 = vpack.c.b16 %v1222, %v1221
      %v1232 = vpack.c.b16 %v1224, %v1223
      %v1233 = vpack.c.b16 %v1226, %v1225
      %v1234 = vpack.c.b16 %v1228, %v1227
      %v1235 = vpack.c.b16 %v1229, %v1229
      %vm1236 = vcmask 1045504
      %v1237 = vrot.slane %v1230, 2
      %v1238 = vrot.slane %v1231, 2
      %v1239 = vsel %vm1236, %v1237, %v1238
      %v1240 = vrot.slane %v1232, 2
      %v1241 = vsel %vm1236, %v1238, %v1240
      %v1242 = vrot.slane %v1233, 2
      %v1243 = vsel %vm1236, %v1240, %v1242
      %v1244 = vrot.slane %v1234, 2
      %v1245 = vsel %vm1236, %v1242, %v1244
      %v1246 = vrot.slane %v1235, 2
      %v1247 = vsel %vm1236, %v1244, %v1246
      %v1250 = vunpack.c.l.b16 %v1196
      %v1251 = vunpack.c.l.b16 %v1197
      %v1252 = vpack.c.b16 %v1251, %v1250
      %v1255 = vsel %vm294, %v1239, 0
      %v1258 = vsel %vm294, %v1241, 0
      %v1261 = vsel %vm294, %v1243, 0
      %v1264 = vsel %vm294, %v1245, 0
      %v1267 = vsel %vm294, %v1247, 0
      %1269 = vmatprep.subr.bf16.mxu0 0
      %1270 = vmatpush1.bf16.msra.mxu0 %v1252
      %1271 = vmatprep.subr.bf16.mxu0 0
      %1272 = vmatpush1.bf16.msra.mxu0 0
      %1273 = vmatprep.subr.bf16.mxu0 0
      %1274 = vmatpush1.bf16.msra.mxu0 0
      %1275 = vmatprep.subr.bf16.mxu0 0
      %1276 = vmatpush1.bf16.msra.mxu0 0
      %1277 = vmatprep.subr.bf16.mxu0 0
      %1278 = vmatpush1.bf16.msra.mxu0 0
      %1279 = vmatprep.subr.bf16.mxu0 0
      %1280 = vmatpush1.bf16.msra.mxu0 0
      %1281 = vmatprep.subr.bf16.mxu0 0
      %1282 = vmatpush1.bf16.msra.mxu0 0
      %1283 = vmatprep.subr.bf16.mxu0 0
      %1284 = vmatpush1.bf16.msra.mxu0 0
      %1285 = vmatprep.subr.bf16.mxu0 0
      %1286 = vmatpush1.bf16.msra.mxu0 0
      %1287 = vmatprep.subr.bf16.mxu0 0
      %1288 = vmatpush1.bf16.msra.mxu0 0
      %1289 = vmatprep.subr.bf16.mxu0 0
      %1290 = vmatpush1.bf16.msra.mxu0 0
      %1291 = vmatprep.subr.bf16.mxu0 0
      %1292 = vmatpush1.bf16.msra.mxu0 0
      %1293 = vmatprep.subr.bf16.mxu0 0
      %1294 = vmatpush1.bf16.msra.mxu0 0
      %1295 = vmatprep.subr.bf16.mxu0 0
      %1296 = vmatpush1.bf16.msra.mxu0 0
      %1297 = vmatprep.subr.bf16.mxu0 0
      %1298 = vmatpush1.bf16.msra.mxu0 0
      %1299 = vmatprep.subr.bf16.mxu0 0
      %1300 = vmatpush1.bf16.msra.mxu0 0
      %1301 = vmatprep.mubr.bf16.mxu0 0
      %1302 = vmatmul.mubr.bf16.gmra.mrb[0].mxu0 %v1255
      %v1303 = vpop.f32.mrb[0].mxu0
      %v1304 = vadd.f32 0.0, %v1303
      %v1305 = vpop.f32.mrb[0].mxu0
      %v1306 = vpop.f32.mrb[0].mxu0
      %v1307 = vadd.f32 0.0, %v1306
      %v1308 = vpop.f32.mrb[0].mxu0
      %1309 = vmatprep.mubr.bf16.mxu0 0
      %1310 = vmatmul.mubr.bf16.gmra.mrb[0].mxu0 %v1258
      %v1311 = vpop.f32.mrb[0].mxu0
      %v1312 = vadd.f32 0.0, %v1311
      %v1313 = vpop.f32.mrb[0].mxu0
      %v1314 = vpop.f32.mrb[0].mxu0
      %v1315 = vadd.f32 0.0, %v1314
      %v1316 = vpop.f32.mrb[0].mxu0
      %1317 = vmatprep.mubr.bf16.mxu0 0
      %1318 = vmatmul.mubr.bf16.gmra.mrb[0].mxu0 %v1261
      %v1319 = vpop.f32.mrb[0].mxu0
      %v1320 = vadd.f32 0.0, %v1319
      %v1321 = vpop.f32.mrb[0].mxu0
      %v1322 = vpop.f32.mrb[0].mxu0
      %v1323 = vadd.f32 0.0, %v1322
      %v1324 = vpop.f32.mrb[0].mxu0
      %1325 = vmatprep.mubr.bf16.mxu0 0
      %1326 = vmatmul.mubr.bf16.gmra.mrb[0].mxu0 %v1264
      %v1327 = vpop.f32.mrb[0].mxu0
      %v1328 = vadd.f32 0.0, %v1327
      %v1329 = vpop.f32.mrb[0].mxu0
      %v1330 = vpop.f32.mrb[0].mxu0
      %v1331 = vadd.f32 0.0, %v1330
      %v1332 = vpop.f32.mrb[0].mxu0
      %1333 = vmatprep.mubr.bf16.mxu0 0
      %1334 = vmatmul.mubr.bf16.gmra.mrb[0].mxu0 %v1267
      %v1335 = vpop.f32.mrb[0].mxu0
      %v1336 = vadd.f32 0.0, %v1335
      %v1337 = vpop.f32.mrb[0].mxu0
      %v1338 = vpop.f32.mrb[0].mxu0
      %v1339 = vadd.f32 0.0, %v1338
      %v1340 = vpop.f32.mrb[0].mxu0
      %1341 = vdwg.mxu0
      %v1342 = vadd.f32 %v1198, %v1304
      %v1343 = vadd.f32 %v1199, %v1307
      %v1344 = vadd.f32 %v1200, %v1312
      %v1345 = vadd.f32 %v1201, %v1315
      %v1346 = vadd.f32 %v1202, %v1320
      %v1347 = vadd.f32 %v1203, %v1323
      %v1348 = vadd.f32 %v1204, %v1328
      %v1349 = vadd.f32 %v1205, %v1331
      %v1350 = vadd.f32 %v1206, %v1336
      %v1351 = vadd.f32 %v1207, %v1339
      %1352 = vst.msk [vmem:[#allocation2] sm:$0xff] %vm230, %v1342
      %1353 = vst.msk [vmem:[#allocation2 + $0x8] sm:$0xff] %vm230, %v1343
      %1354 = vst.msk [vmem:[#allocation2 + $0x10] sm:$0xff] %vm230, %v1344
      %1355 = vst.msk [vmem:[#allocation2 + $0x18] sm:$0xff] %vm230, %v1345
      %1356 = vst.msk [vmem:[#allocation2 + $0x20] sm:$0xff] %vm230, %v1346
      %1357 = vst.msk [vmem:[#allocation2 + $0x28] sm:$0xff] %vm230, %v1347
      %1358 = vst.msk [vmem:[#allocation2 + $0x30] sm:$0xff] %vm230, %v1348
      %1359 = vst.msk [vmem:[#allocation2 + $0x38] sm:$0xff] %vm230, %v1349
      %1360 = vst.msk [vmem:[#allocation2 + $0x40] sm:$0xff] %vm230, %v1350
      %1361 = vst.msk [vmem:[#allocation2 + $0x48] sm:$0xff] %vm230, %v1351
      %v1362 = vld [vmem:[%s206 + $0x8] sm:$0xc]
      %v1363 = vld [vmem:[%s206 + $0xc] sm:$0xf]
      %v1364 = vld [vmem:[%s206 + $0x10] sm:$0xf]
      %v1365 = vld [vmem:[%s206 + $0x14] sm:$0xf]
      %v1366 = vld [vmem:[%s206 + $0x18] sm:$0xf]
      %v1367 = vld [vmem:[%s206 + $0x1c] sm:$0xf]
      %v1368 = vld [vmem:[%s206 + $0x20] sm:$0xf]
      %v1369 = vld [vmem:[%s206 + $0x24] sm:$0xf]
      %v1370 = vld [vmem:[%s206 + $0x28] sm:$0xf]
      %v1371 = vld [vmem:[%s206 + $0x2c] sm:$0xf]
      %v1372 = vld [vmem:[%s206 + $0x30] sm:$0x3]
      %v1373 = vld [vmem:[%s210 + $0x30] sm:$0xf]
      %v1374 = vld [vmem:[%s210 + $0x34] sm:$0xf]
      %v1375 = vld [vmem:[#allocation2] sm:$0xff]
      %v1376 = vld [vmem:[#allocation2 + $0x8] sm:$0xff]
      %v1377 = vld [vmem:[#allocation2 + $0x10] sm:$0xff]
      %v1378 = vld [vmem:[#allocation2 + $0x18] sm:$0xff]
      %v1379 = vld [vmem:[#allocation2 + $0x20] sm:$0xff]
      %v1380 = vld [vmem:[#allocation2 + $0x28] sm:$0xff]
      %v1381 = vld [vmem:[#allocation2 + $0x30] sm:$0xff]
      %v1382 = vld [vmem:[#allocation2 + $0x38] sm:$0xff]
      %v1383 = vld [vmem:[#allocation2 + $0x40] sm:$0xff]
      %v1384 = vld [vmem:[#allocation2 + $0x48] sm:$0xff]
      %v1396 = vunpack.c.l.b16 %v1362
      %v1397 = vunpack.c.l.b16 %v1363
      %v1398 = vunpack.c.l.b16 %v1364
      %v1399 = vunpack.c.l.b16 %v1365
      %v1400 = vunpack.c.l.b16 %v1366
      %v1401 = vunpack.c.l.b16 %v1367
      %v1402 = vunpack.c.l.b16 %v1368
      %v1403 = vunpack.c.l.b16 %v1369
      %v1404 = vunpack.c.l.b16 %v1370
      %v1405 = vunpack.c.l.b16 %v1371
      %v1406 = vunpack.c.l.b16 %v1372
      %v1407 = vpack.c.b16 %v1397, %v1396
      %v1408 = vpack.c.b16 %v1399, %v1398
      %v1409 = vpack.c.b16 %v1401, %v1400
      %v1410 = vpack.c.b16 %v1403, %v1402
      %v1411 = vpack.c.b16 %v1405, %v1404
      %v1412 = vpack.c.b16 %v1406, %v1406
      %v1413 = vrot.slane %v1407, 2
      %v1414 = vrot.slane %v1408, 2
      %v1415 = vsel %vm1236, %v1413, %v1414
      %v1416 = vrot.slane %v1409, 2
      %v1417 = vsel %vm1236, %v1414, %v1416
      %v1418 = vrot.slane %v1410, 2
      %v1419 = vsel %vm1236, %v1416, %v1418
      %v1420 = vrot.slane %v1411, 2
      %v1421 = vsel %vm1236, %v1418, %v1420
      %v1422 = vrot.slane %v1412, 2
      %v1423 = vsel %vm1236, %v1420, %v1422
      %v1426 = vunpack.c.l.b16 %v1373
      %v1427 = vunpack.c.l.b16 %v1374
      %v1428 = vpack.c.b16 %v1427, %v1426
      %v1431 = vsel %vm294, %v1415, 0
      %v1434 = vsel %vm294, %v1417, 0
      %v1437 = vsel %vm294, %v1419, 0
      %v1440 = vsel %vm294, %v1421, 0
      %v1443 = vsel %vm294, %v1423, 0
      %1445 = vmatprep.subr.bf16.mxu0 0
      %1446 = vmatpush1.bf16.msra.mxu0 %v1428
      %1447 = vmatprep.subr.bf16.mxu0 0
      %1448 = vmatpush1.bf16.msra.mxu0 0
      %1449 = vmatprep.subr.bf16.mxu0 0
      %1450 = vmatpush1.bf16.msra.mxu0 0
      %1451 = vmatprep.subr.bf16.mxu0 0
      %1452 = vmatpush1.bf16.msra.mxu0 0
      %1453 = vmatprep.subr.bf16.mxu0 0
      %1454 = vmatpush1.bf16.msra.mxu0 0
      %1455 = vmatprep.subr.bf16.mxu0 0
      %1456 = vmatpush1.bf16.msra.mxu0 0
      %1457 = vmatprep.subr.bf16.mxu0 0
      %1458 = vmatpush1.bf16.msra.mxu0 0
      %1459 = vmatprep.subr.bf16.mxu0 0
      %1460 = vmatpush1.bf16.msra.mxu0 0
      %1461 = vmatprep.subr.bf16.mxu0 0
      %1462 = vmatpush1.bf16.msra.mxu0 0
      %1463 = vmatprep.subr.bf16.mxu0 0
      %1464 = vmatpush1.bf16.msra.mxu0 0
      %1465 = vmatprep.subr.bf16.mxu0 0
      %1466 = vmatpush1.bf16.msra.mxu0 0
      %1467 = vmatprep.subr.bf16.mxu0 0
      %1468 = vmatpush1.bf16.msra.mxu0 0
      %1469 = vmatprep.subr.bf16.mxu0 0
      %1470 = vmatpush1.bf16.msra.mxu0 0
      %1471 = vmatprep.subr.bf16.mxu0 0
      %1472 = vmatpush1.bf16.msra.mxu0 0
      %1473 = vmatprep.subr.bf16.mxu0 0
      %1474 = vmatpush1.bf16.msra.mxu0 0
      %1475 = vmatprep.subr.bf16.mxu0 0
      %1476 = vmatpush1.bf16.msra.mxu0 0
      %1477 = vmatprep.mubr.bf16.mxu0 0
      %1478 = vmatmul.mubr.bf16.gmra.mrb[0].mxu0 %v1431
      %v1479 = vpop.f32.mrb[0].mxu0
      %v1480 = vadd.f32 0.0, %v1479
      %v1481 = vpop.f32.mrb[0].mxu0
      %v1482 = vpop.f32.mrb[0].mxu0
      %v1483 = vadd.f32 0.0, %v1482
      %v1484 = vpop.f32.mrb[0].mxu0
      %1485 = vmatprep.mubr.bf16.mxu0 0
      %1486 = vmatmul.mubr.bf16.gmra.mrb[0].mxu0 %v1434
      %v1487 = vpop.f32.mrb[0].mxu0
      %v1488 = vadd.f32 0.0, %v1487
      %v1489 = vpop.f32.mrb[0].mxu0
      %v1490 = vpop.f32.mrb[0].mxu0
      %v1491 = vadd.f32 0.0, %v1490
      %v1492 = vpop.f32.mrb[0].mxu0
      %1493 = vmatprep.mubr.bf16.mxu0 0
      %1494 = vmatmul.mubr.bf16.gmra.mrb[0].mxu0 %v1437
      %v1495 = vpop.f32.mrb[0].mxu0
      %v1496 = vadd.f32 0.0, %v1495
      %v1497 = vpop.f32.mrb[0].mxu0
      %v1498 = vpop.f32.mrb[0].mxu0
      %v1499 = vadd.f32 0.0, %v1498
      %v1500 = vpop.f32.mrb[0].mxu0
      %1501 = vmatprep.mubr.bf16.mxu0 0
      %1502 = vmatmul.mubr.bf16.gmra.mrb[0].mxu0 %v1440
      %v1503 = vpop.f32.mrb[0].mxu0
      %v1504 = vadd.f32 0.0, %v1503
      %v1505 = vpop.f32.mrb[0].mxu0
      %v1506 = vpop.f32.mrb[0].mxu0
      %v1507 = vadd.f32 0.0, %v1506
      %v1508 = vpop.f32.mrb[0].mxu0
      %1509 = vmatprep.mubr.bf16.mxu0 0
      %1510 = vmatmul.mubr.bf16.gmra.mrb[0].mxu0 %v1443
      %v1511 = vpop.f32.mrb[0].mxu0
      %v1512 = vadd.f32 0.0, %v1511
      %v1513 = vpop.f32.mrb[0].mxu0
      %v1514 = vpop.f32.mrb[0].mxu0
      %v1515 = vadd.f32 0.0, %v1514
      %v1516 = vpop.f32.mrb[0].mxu0
      %1517 = vdwg.mxu0
      %v1518 = vadd.f32 %v1375, %v1480
      %v1519 = vadd.f32 %v1376, %v1483
      %v1520 = vadd.f32 %v1377, %v1488
      %v1521 = vadd.f32 %v1378, %v1491
      %v1522 = vadd.f32 %v1379, %v1496
      %v1523 = vadd.f32 %v1380, %v1499
      %v1524 = vadd.f32 %v1381, %v1504
      %v1525 = vadd.f32 %v1382, %v1507
      %v1526 = vadd.f32 %v1383, %v1512
      %v1527 = vadd.f32 %v1384, %v1515
      %1528 = vst.msk [vmem:[#allocation2] sm:$0xff] %vm230, %v1518
      %1529 = vst.msk [vmem:[#allocation2 + $0x8] sm:$0xff] %vm230, %v1519
      %1530 = vst.msk [vmem:[#allocation2 + $0x10] sm:$0xff] %vm230, %v1520
      %1531 = vst.msk [vmem:[#allocation2 + $0x18] sm:$0xff] %vm230, %v1521
      %1532 = vst.msk [vmem:[#allocation2 + $0x20] sm:$0xff] %vm230, %v1522
      %1533 = vst.msk [vmem:[#allocation2 + $0x28] sm:$0xff] %vm230, %v1523
      %1534 = vst.msk [vmem:[#allocation2 + $0x30] sm:$0xff] %vm230, %v1524
      %1535 = vst.msk [vmem:[#allocation2 + $0x38] sm:$0xff] %vm230, %v1525
      %1536 = vst.msk [vmem:[#allocation2 + $0x40] sm:$0xff] %vm230, %v1526
      %1537 = vst.msk [vmem:[#allocation2 + $0x48] sm:$0xff] %vm230, %v1527
      %v1538 = vld [vmem:[%s206 + $0x8] sm:$0xc]
      %v1539 = vld [vmem:[%s206 + $0xc] sm:$0xf]
      %v1540 = vld [vmem:[%s206 + $0x10] sm:$0xf]
      %v1541 = vld [vmem:[%s206 + $0x14] sm:$0xf]
      %v1542 = vld [vmem:[%s206 + $0x18] sm:$0xf]
      %v1543 = vld [vmem:[%s206 + $0x1c] sm:$0xf]
      %v1544 = vld [vmem:[%s206 + $0x20] sm:$0xf]
      %v1545 = vld [vmem:[%s206 + $0x24] sm:$0xf]
      %v1546 = vld [vmem:[%s206 + $0x28] sm:$0xf]
      %v1547 = vld [vmem:[%s206 + $0x2c] sm:$0xf]
      %v1548 = vld [vmem:[%s206 + $0x30] sm:$0x7]
      %v1549 = vld [vmem:[%s210 + $0x38] sm:$0xf]
      %v1550 = vld [vmem:[%s210 + $0x3c] sm:$0xf]
      %v1551 = vld [vmem:[#allocation2] sm:$0xff]
      %v1552 = vld [vmem:[#allocation2 + $0x8] sm:$0xff]
      %v1553 = vld [vmem:[#allocation2 + $0x10] sm:$0xff]
      %v1554 = vld [vmem:[#allocation2 + $0x18] sm:$0xff]
      %v1555 = vld [vmem:[#allocation2 + $0x20] sm:$0xff]
      %v1556 = vld [vmem:[#allocation2 + $0x28] sm:$0xff]
      %v1557 = vld [vmem:[#allocation2 + $0x30] sm:$0xff]
      %v1558 = vld [vmem:[#allocation2 + $0x38] sm:$0xff]
      %v1559 = vld [vmem:[#allocation2 + $0x40] sm:$0xff]
      %v1560 = vld [vmem:[#allocation2 + $0x48] sm:$0xff]
      %v1572 = vunpack.c.l.b16 %v1538
      %v1573 = vunpack.c.l.b16 %v1539
      %v1574 = vunpack.c.l.b16 %v1540
      %v1575 = vunpack.c.l.b16 %v1541
      %v1576 = vunpack.c.l.b16 %v1542
      %v1577 = vunpack.c.l.b16 %v1543
      %v1578 = vunpack.c.l.b16 %v1544
      %v1579 = vunpack.c.l.b16 %v1545
      %v1580 = vunpack.c.l.b16 %v1546
      %v1581 = vunpack.c.l.b16 %v1547
      %v1582 = vunpack.c.l.b16 %v1548
      %v1583 = vpack.c.b16 %v1573, %v1572
      %v1584 = vpack.c.b16 %v1575, %v1574
      %v1585 = vpack.c.b16 %v1577, %v1576
      %v1586 = vpack.c.b16 %v1579, %v1578
      %v1587 = vpack.c.b16 %v1581, %v1580
      %v1588 = vpack.c.b16 %v1582, %v1582
      %vm1589 = vsmask.f32 5376
      %v1591 = vshrl.u32 %v1583, 16
      %v1593 = vrot.slane %v1591, 2
      %v1594 = vshll.u32 %v1583, 16
      %v1596 = vrot.slane %v1594, 3
      %v1597 = vor.u32 %v1593, %v1596
      %v1599 = vshrl.u32 %v1584, 16
      %v1601 = vrot.slane %v1599, 2
      %v1602 = vshll.u32 %v1584, 16
      %v1604 = vrot.slane %v1602, 3
      %v1605 = vor.u32 %v1601, %v1604
      %v1606 = vsel %vm1589, %v1597, %v1605
      %v1608 = vshrl.u32 %v1585, 16
      %v1610 = vrot.slane %v1608, 2
      %v1611 = vshll.u32 %v1585, 16
      %v1613 = vrot.slane %v1611, 3
      %v1614 = vor.u32 %v1610, %v1613
      %v1615 = vsel %vm1589, %v1605, %v1614
      %v1617 = vshrl.u32 %v1586, 16
      %v1619 = vrot.slane %v1617, 2
      %v1620 = vshll.u32 %v1586, 16
      %v1622 = vrot.slane %v1620, 3
      %v1623 = vor.u32 %v1619, %v1622
      %v1624 = vsel %vm1589, %v1614, %v1623
      %v1626 = vshrl.u32 %v1587, 16
      %v1628 = vrot.slane %v1626, 2
      %v1629 = vshll.u32 %v1587, 16
      %v1631 = vrot.slane %v1629, 3
      %v1632 = vor.u32 %v1628, %v1631
      %v1633 = vsel %vm1589, %v1623, %v1632
      %v1635 = vshrl.u32 %v1588, 16
      %v1637 = vrot.slane %v1635, 2
      %v1638 = vshll.u32 %v1588, 16
      %v1640 = vrot.slane %v1638, 3
      %v1641 = vor.u32 %v1637, %v1640
      %v1642 = vsel %vm1589, %v1632, %v1641
      %v1645 = vunpack.c.l.b16 %v1549
      %v1646 = vunpack.c.l.b16 %v1550
      %v1647 = vpack.c.b16 %v1646, %v1645
      %v1650 = vsel %vm294, %v1606, 0
      %v1653 = vsel %vm294, %v1615, 0
      %v1656 = vsel %vm294, %v1624, 0
      %v1659 = vsel %vm294, %v1633, 0
      %v1662 = vsel %vm294, %v1642, 0
      %1664 = vmatprep.subr.bf16.mxu0 0
      %1665 = vmatpush1.bf16.msra.mxu0 %v1647
      %1666 = vmatprep.subr.bf16.mxu0 0
      %1667 = vmatpush1.bf16.msra.mxu0 0
      %1668 = vmatprep.subr.bf16.mxu0 0
      %1669 = vmatpush1.bf16.msra.mxu0 0
      %1670 = vmatprep.subr.bf16.mxu0 0
      %1671 = vmatpush1.bf16.msra.mxu0 0
      %1672 = vmatprep.subr.bf16.mxu0 0
      %1673 = vmatpush1.bf16.msra.mxu0 0
      %1674 = vmatprep.subr.bf16.mxu0 0
      %1675 = vmatpush1.bf16.msra.mxu0 0
      %1676 = vmatprep.subr.bf16.mxu0 0
      %1677 = vmatpush1.bf16.msra.mxu0 0
      %1678 = vmatprep.subr.bf16.mxu0 0
      %1679 = vmatpush1.bf16.msra.mxu0 0
      %1680 = vmatprep.subr.bf16.mxu0 0
      %1681 = vmatpush1.bf16.msra.mxu0 0
      %1682 = vmatprep.subr.bf16.mxu0 0
      %1683 = vmatpush1.bf16.msra.mxu0 0
      %1684 = vmatprep.subr.bf16.mxu0 0
      %1685 = vmatpush1.bf16.msra.mxu0 0
      %1686 = vmatprep.subr.bf16.mxu0 0
      %1687 = vmatpush1.bf16.msra.mxu0 0
      %1688 = vmatprep.subr.bf16.mxu0 0
      %1689 = vmatpush1.bf16.msra.mxu0 0
      %1690 = vmatprep.subr.bf16.mxu0 0
      %1691 = vmatpush1.bf16.msra.mxu0 0
      %1692 = vmatprep.subr.bf16.mxu0 0
      %1693 = vmatpush1.bf16.msra.mxu0 0
      %1694 = vmatprep.subr.bf16.mxu0 0
      %1695 = vmatpush1.bf16.msra.mxu0 0
      %1696 = vmatprep.mubr.bf16.mxu0 0
      %1697 = vmatmul.mubr.bf16.gmra.mrb[0].mxu0 %v1650
      %v1698 = vpop.f32.mrb[0].mxu0
      %v1699 = vadd.f32 0.0, %v1698
      %v1700 = vpop.f32.mrb[0].mxu0
      %v1701 = vpop.f32.mrb[0].mxu0
      %v1702 = vadd.f32 0.0, %v1701
      %v1703 = vpop.f32.mrb[0].mxu0
      %1704 = vmatprep.mubr.bf16.mxu0 0
      %1705 = vmatmul.mubr.bf16.gmra.mrb[0].mxu0 %v1653
      %v1706 = vpop.f32.mrb[0].mxu0
      %v1707 = vadd.f32 0.0, %v1706
      %v1708 = vpop.f32.mrb[0].mxu0
      %v1709 = vpop.f32.mrb[0].mxu0
      %v1710 = vadd.f32 0.0, %v1709
      %v1711 = vpop.f32.mrb[0].mxu0
      %1712 = vmatprep.mubr.bf16.mxu0 0
      %1713 = vmatmul.mubr.bf16.gmra.mrb[0].mxu0 %v1656
      %v1714 = vpop.f32.mrb[0].mxu0
      %v1715 = vadd.f32 0.0, %v1714
      %v1716 = vpop.f32.mrb[0].mxu0
      %v1717 = vpop.f32.mrb[0].mxu0
      %v1718 = vadd.f32 0.0, %v1717
      %v1719 = vpop.f32.mrb[0].mxu0
      %1720 = vmatprep.mubr.bf16.mxu0 0
      %1721 = vmatmul.mubr.bf16.gmra.mrb[0].mxu0 %v1659
      %v1722 = vpop.f32.mrb[0].mxu0
      %v1723 = vadd.f32 0.0, %v1722
      %v1724 = vpop.f32.mrb[0].mxu0
      %v1725 = vpop.f32.mrb[0].mxu0
      %v1726 = vadd.f32 0.0, %v1725
      %v1727 = vpop.f32.mrb[0].mxu0
      %1728 = vmatprep.mubr.bf16.mxu0 0
      %1729 = vmatmul.mubr.bf16.gmra.mrb[0].mxu0 %v1662
      %v1730 = vpop.f32.mrb[0].mxu0
      %v1731 = vadd.f32 0.0, %v1730
      %v1732 = vpop.f32.mrb[0].mxu0
      %v1733 = vpop.f32.mrb[0].mxu0
      %v1734 = vadd.f32 0.0, %v1733
      %v1735 = vpop.f32.mrb[0].mxu0
      %1736 = vdwg.mxu0
      %v1737 = vadd.f32 %v1551, %v1699
      %v1738 = vadd.f32 %v1552, %v1702
      %v1739 = vadd.f32 %v1553, %v1707
      %v1740 = vadd.f32 %v1554, %v1710
      %v1741 = vadd.f32 %v1555, %v1715
      %v1742 = vadd.f32 %v1556, %v1718
      %v1743 = vadd.f32 %v1557, %v1723
      %v1744 = vadd.f32 %v1558, %v1726
      %v1745 = vadd.f32 %v1559, %v1731
      %v1746 = vadd.f32 %v1560, %v1734
      %1747 = vst.msk [vmem:[#allocation2] sm:$0xff] %vm230, %v1737
      %1748 = vst.msk [vmem:[#allocation2 + $0x8] sm:$0xff] %vm230, %v1738
      %1749 = vst.msk [vmem:[#allocation2 + $0x10] sm:$0xff] %vm230, %v1739
      %1750 = vst.msk [vmem:[#allocation2 + $0x18] sm:$0xff] %vm230, %v1740
      %1751 = vst.msk [vmem:[#allocation2 + $0x20] sm:$0xff] %vm230, %v1741
      %1752 = vst.msk [vmem:[#allocation2 + $0x28] sm:$0xff] %vm230, %v1742
      %1753 = vst.msk [vmem:[#allocation2 + $0x30] sm:$0xff] %vm230, %v1743
      %1754 = vst.msk [vmem:[#allocation2 + $0x38] sm:$0xff] %vm230, %v1744
      %1755 = vst.msk [vmem:[#allocation2 + $0x40] sm:$0xff] %vm230, %v1745
      %1756 = vst.msk [vmem:[#allocation2 + $0x48] sm:$0xff] %vm230, %v1746
      %v1757 = vld [vmem:[%s206 + $0x8] sm:$0x8]
      %v1758 = vld [vmem:[%s206 + $0xc] sm:$0xf]
      %v1759 = vld [vmem:[%s206 + $0x10] sm:$0xf]
      %v1760 = vld [vmem:[%s206 + $0x14] sm:$0xf]
      %v1761 = vld [vmem:[%s206 + $0x18] sm:$0xf]
      %v1762 = vld [vmem:[%s206 + $0x1c] sm:$0xf]
      %v1763 = vld [vmem:[%s206 + $0x20] sm:$0xf]
      %v1764 = vld [vmem:[%s206 + $0x24] sm:$0xf]
      %v1765 = vld [vmem:[%s206 + $0x28] sm:$0xf]
      %v1766 = vld [vmem:[%s206 + $0x2c] sm:$0xf]
      %v1767 = vld [vmem:[%s206 + $0x30] sm:$0x7]
      %v1768 = vld [vmem:[%s210 + $0x40] sm:$0xf]
      %v1769 = vld [vmem:[%s210 + $0x44] sm:$0xf]
      %v1770 = vld [vmem:[#allocation2] sm:$0xff]
      %v1771 = vld [vmem:[#allocation2 + $0x8] sm:$0xff]
      %v1772 = vld [vmem:[#allocation2 + $0x10] sm:$0xff]
      %v1773 = vld [vmem:[#allocation2 + $0x18] sm:$0xff]
      %v1774 = vld [vmem:[#allocation2 + $0x20] sm:$0xff]
      %v1775 = vld [vmem:[#allocation2 + $0x28] sm:$0xff]
      %v1776 = vld [vmem:[#allocation2 + $0x30] sm:$0xff]
      %v1777 = vld [vmem:[#allocation2 + $0x38] sm:$0xff]
      %v1778 = vld [vmem:[#allocation2 + $0x40] sm:$0xff]
      %v1779 = vld [vmem:[#allocation2 + $0x48] sm:$0xff]
      %v1791 = vunpack.c.l.b16 %v1757
      %v1792 = vunpack.c.l.b16 %v1758
      %v1793 = vunpack.c.l.b16 %v1759
      %v1794 = vunpack.c.l.b16 %v1760
      %v1795 = vunpack.c.l.b16 %v1761
      %v1796 = vunpack.c.l.b16 %v1762
      %v1797 = vunpack.c.l.b16 %v1763
      %v1798 = vunpack.c.l.b16 %v1764
      %v1799 = vunpack.c.l.b16 %v1765
      %v1800 = vunpack.c.l.b16 %v1766
      %v1801 = vunpack.c.l.b16 %v1767
      %v1802 = vpack.c.b16 %v1792, %v1791
      %v1803 = vpack.c.b16 %v1794, %v1793
      %v1804 = vpack.c.b16 %v1796, %v1795
      %v1805 = vpack.c.b16 %v1798, %v1797
      %v1806 = vpack.c.b16 %v1800, %v1799
      %v1807 = vpack.c.b16 %v1801, %v1801
      %vm1808 = vcmask 1044480
      %v1809 = vrot.slane %v1802, 3
      %v1810 = vrot.slane %v1803, 3
      %v1811 = vsel %vm1808, %v1809, %v1810
      %v1812 = vrot.slane %v1804, 3
      %v1813 = vsel %vm1808, %v1810, %v1812
      %v1814 = vrot.slane %v1805, 3
      %v1815 = vsel %vm1808, %v1812, %v1814
      %v1816 = vrot.slane %v1806, 3
      %v1817 = vsel %vm1808, %v1814, %v1816
      %v1818 = vrot.slane %v1807, 3
      %v1819 = vsel %vm1808, %v1816, %v1818
      %v1822 = vunpack.c.l.b16 %v1768
      %v1823 = vunpack.c.l.b16 %v1769
      %v1824 = vpack.c.b16 %v1823, %v1822
      %v1827 = vsel %vm294, %v1811, 0
      %v1830 = vsel %vm294, %v1813, 0
      %v1833 = vsel %vm294, %v1815, 0
      %v1836 = vsel %vm294, %v1817, 0
      %v1839 = vsel %vm294, %v1819, 0
      %1841 = vmatprep.subr.bf16.mxu0 0
      %1842 = vmatpush1.bf16.msra.mxu0 %v1824
      %1843 = vmatprep.subr.bf16.mxu0 0
      %1844 = vmatpush1.bf16.msra.mxu0 0
      %1845 = vmatprep.subr.bf16.mxu0 0
      %1846 = vmatpush1.bf16.msra.mxu0 0
      %1847 = vmatprep.subr.bf16.mxu0 0
      %1848 = vmatpush1.bf16.msra.mxu0 0
      %1849 = vmatprep.subr.bf16.mxu0 0
      %1850 = vmatpush1.bf16.msra.mxu0 0
      %1851 = vmatprep.subr.bf16.mxu0 0
      %1852 = vmatpush1.bf16.msra.mxu0 0
      %1853 = vmatprep.subr.bf16.mxu0 0
      %1854 = vmatpush1.bf16.msra.mxu0 0
      %1855 = vmatprep.subr.bf16.mxu0 0
      %1856 = vmatpush1.bf16.msra.mxu0 0
      %1857 = vmatprep.subr.bf16.mxu0 0
      %1858 = vmatpush1.bf16.msra.mxu0 0
      %1859 = vmatprep.subr.bf16.mxu0 0
      %1860 = vmatpush1.bf16.msra.mxu0 0
      %1861 = vmatprep.subr.bf16.mxu0 0
      %1862 = vmatpush1.bf16.msra.mxu0 0
      %1863 = vmatprep.subr.bf16.mxu0 0
      %1864 = vmatpush1.bf16.msra.mxu0 0
      %1865 = vmatprep.subr.bf16.mxu0 0
      %1866 = vmatpush1.bf16.msra.mxu0 0
      %1867 = vmatprep.subr.bf16.mxu0 0
      %1868 = vmatpush1.bf16.msra.mxu0 0
      %1869 = vmatprep.subr.bf16.mxu0 0
      %1870 = vmatpush1.bf16.msra.mxu0 0
      %1871 = vmatprep.subr.bf16.mxu0 0
      %1872 = vmatpush1.bf16.msra.mxu0 0
      %1873 = vmatprep.mubr.bf16.mxu0 0
      %1874 = vmatmul.mubr.bf16.gmra.mrb[0].mxu0 %v1827
      %v1875 = vpop.f32.mrb[0].mxu0
      %v1876 = vadd.f32 0.0, %v1875
      %v1877 = vpop.f32.mrb[0].mxu0
      %v1878 = vpop.f32.mrb[0].mxu0
      %v1879 = vadd.f32 0.0, %v1878
      %v1880 = vpop.f32.mrb[0].mxu0
      %1881 = vmatprep.mubr.bf16.mxu0 0
      %1882 = vmatmul.mubr.bf16.gmra.mrb[0].mxu0 %v1830
      %v1883 = vpop.f32.mrb[0].mxu0
      %v1884 = vadd.f32 0.0, %v1883
      %v1885 = vpop.f32.mrb[0].mxu0
      %v1886 = vpop.f32.mrb[0].mxu0
      %v1887 = vadd.f32 0.0, %v1886
      %v1888 = vpop.f32.mrb[0].mxu0
      %1889 = vmatprep.mubr.bf16.mxu0 0
      %1890 = vmatmul.mubr.bf16.gmra.mrb[0].mxu0 %v1833
      %v1891 = vpop.f32.mrb[0].mxu0
      %v1892 = vadd.f32 0.0, %v1891
      %v1893 = vpop.f32.mrb[0].mxu0
      %v1894 = vpop.f32.mrb[0].mxu0
      %v1895 = vadd.f32 0.0, %v1894
      %v1896 = vpop.f32.mrb[0].mxu0
      %1897 = vmatprep.mubr.bf16.mxu0 0
      %1898 = vmatmul.mubr.bf16.gmra.mrb[0].mxu0 %v1836
      %v1899 = vpop.f32.mrb[0].mxu0
      %v1900 = vadd.f32 0.0, %v1899
      %v1901 = vpop.f32.mrb[0].mxu0
      %v1902 = vpop.f32.mrb[0].mxu0
      %v1903 = vadd.f32 0.0, %v1902
      %v1904 = vpop.f32.mrb[0].mxu0
      %1905 = vmatprep.mubr.bf16.mxu0 0
      %1906 = vmatmul.mubr.bf16.gmra.mrb[0].mxu0 %v1839
      %v1907 = vpop.f32.mrb[0].mxu0
      %v1908 = vadd.f32 0.0, %v1907
      %v1909 = vpop.f32.mrb[0].mxu0
      %v1910 = vpop.f32.mrb[0].mxu0
      %v1911 = vadd.f32 0.0, %v1910
      %v1912 = vpop.f32.mrb[0].mxu0
      %1913 = vdwg.mxu0
      %v1914 = vadd.f32 %v1770, %v1876
      %v1915 = vadd.f32 %v1771, %v1879
      %v1916 = vadd.f32 %v1772, %v1884
      %v1917 = vadd.f32 %v1773, %v1887
      %v1918 = vadd.f32 %v1774, %v1892
      %v1919 = vadd.f32 %v1775, %v1895
      %v1920 = vadd.f32 %v1776, %v1900
      %v1921 = vadd.f32 %v1777, %v1903
      %v1922 = vadd.f32 %v1778, %v1908
      %v1923 = vadd.f32 %v1779, %v1911
      %1924 = vst.msk [vmem:[#allocation2] sm:$0xff] %vm230, %v1914
      %1925 = vst.msk [vmem:[#allocation2 + $0x8] sm:$0xff] %vm230, %v1915
      %1926 = vst.msk [vmem:[#allocation2 + $0x10] sm:$0xff] %vm230, %v1916
      %1927 = vst.msk [vmem:[#allocation2 + $0x18] sm:$0xff] %vm230, %v1917
      %1928 = vst.msk [vmem:[#allocation2 + $0x20] sm:$0xff] %vm230, %v1918
      %1929 = vst.msk [vmem:[#allocation2 + $0x28] sm:$0xff] %vm230, %v1919
      %1930 = vst.msk [vmem:[#allocation2 + $0x30] sm:$0xff] %vm230, %v1920
      %1931 = vst.msk [vmem:[#allocation2 + $0x38] sm:$0xff] %vm230, %v1921
      %1932 = vst.msk [vmem:[#allocation2 + $0x40] sm:$0xff] %vm230, %v1922
      %1933 = vst.msk [vmem:[#allocation2 + $0x48] sm:$0xff] %vm230, %v1923
      %v1934 = vld [vmem:[#allocation2] sm:$0xff]
      %v1935 = vld [vmem:[#allocation2 + $0x8] sm:$0xff]
      %v1936 = vld [vmem:[#allocation2 + $0x10] sm:$0xff]
      %v1937 = vld [vmem:[#allocation2 + $0x18] sm:$0xff]
      %v1938 = vld [vmem:[#allocation2 + $0x20] sm:$0xff]
      %v1939 = vld [vmem:[#allocation2 + $0x28] sm:$0xff]
      %v1940 = vld [vmem:[#allocation2 + $0x30] sm:$0xff]
      %v1941 = vld [vmem:[#allocation2 + $0x38] sm:$0xff]
      %v1942 = vld [vmem:[#allocation2 + $0x40] sm:$0xff]
      %v1943 = vld [vmem:[#allocation2 + $0x48] sm:$0xff]
      %v1944 = vmax.f32 %v1934, 0.0
      %v1945 = vmax.f32 %v1935, 0.0
      %v1946 = vmax.f32 %v1936, 0.0
      %v1947 = vmax.f32 %v1937, 0.0
      %v1948 = vmax.f32 %v1938, 0.0
      %v1949 = vmax.f32 %v1939, 0.0
      %v1950 = vmax.f32 %v1940, 0.0
      %v1951 = vmax.f32 %v1941, 0.0
      %v1952 = vmax.f32 %v1942, 0.0
      %v1953 = vmax.f32 %v1943, 0.0
      %v1954 = vpack.c.bf16 %v1945, %v1944
      %v1955 = vpack.c.bf16 %v1947, %v1946
      %v1956 = vpack.c.bf16 %v1949, %v1948
      %v1957 = vpack.c.bf16 %v1951, %v1950
      %v1958 = vpack.c.bf16 %v1953, %v1952
      %v1964 = vunpack.c.l.b16 %v1954
      %v1965 = vunpack.c.h.b16 %v1954
      %v1966 = vunpack.c.l.b16 %v1955
      %v1967 = vunpack.c.h.b16 %v1955
      %v1968 = vunpack.c.l.b16 %v1956
      %v1969 = vunpack.c.h.b16 %v1956
      %v1970 = vunpack.c.l.b16 %v1957
      %v1971 = vunpack.c.h.b16 %v1957
      %v1972 = vunpack.c.l.b16 %v1958
      %v1973 = vunpack.c.h.b16 %v1958
      %v1974 = vpack.c.b16 %v1964, %v1964
      %v1975 = vpack.c.b16 %v1965, %v1965
      %v1976 = vpack.c.b16 %v1966, %v1966
      %v1977 = vpack.c.b16 %v1967, %v1967
      %v1978 = vpack.c.b16 %v1968, %v1968
      %v1979 = vpack.c.b16 %v1969, %v1969
      %v1980 = vpack.c.b16 %v1970, %v1970
      %v1981 = vpack.c.b16 %v1971, %v1971
      %v1982 = vpack.c.b16 %v1972, %v1972
      %v1983 = vpack.c.b16 %v1973, %v1973
      %vm1994 = vcmask 257024
      %1995 = vst.msk [vmem:[%s221] sm:$0xf] %vm1994, %v1974
      %1996 = vst.msk [vmem:[%s221 + $0x4] sm:$0xf] %vm1994, %v1975
      %1997 = vst.msk [vmem:[%s221 + $0x8] sm:$0xf] %vm1994, %v1976
      %1998 = vst.msk [vmem:[%s221 + $0xc] sm:$0xf] %vm1994, %v1977
      %1999 = vst.msk [vmem:[%s221 + $0x10] sm:$0xf] %vm1994, %v1978
      %2000 = vst.msk [vmem:[%s221 + $0x14] sm:$0xf] %vm1994, %v1979
      %2001 = vst.msk [vmem:[%s221 + $0x18] sm:$0xf] %vm1994, %v1980
      %2002 = vst.msk [vmem:[%s221 + $0x1c] sm:$0xf] %vm1994, %v1981
      %2003 = vst.msk [vmem:[%s221 + $0x20] sm:$0xf] %vm1994, %v1982
      %2004 = vst.msk [vmem:[%s221 + $0x24] sm:$0xf] %vm1994, %v1983
      %p2005 = scmp.lt.s32.totalorder %s18, 1
      %s2006 = scalar_select %p2005, %s18, 1
      %p2007 = scmp.lt.s32.totalorder %s19, 0
      %s2008 = scalar_select %p2007, %s19, 0
      %s2009 = smul.addr %s2006, 10
      %s2010 = sadd.s32 %s2008, %s2009
      %s2011 = smul.addr %s2010, 4
      %s2012 = scalar_lea.vmem %s3, %s2011
      // Predicated region
      $region33: #{tpu_custom_call.1} parent=31 // pred_check
        %p2013 = pneg %p124
      $region34: #{tpu_custom_call.1} parent=31 // pred_check_branch
        %2015 = sbr.rel (%p2013) target = $region36
      $region35: #{tpu_custom_call.1} parent=31 // pred_region
        _
      $region36: #{tpu_custom_call.1} parent=31 // pred_fallthru
        _
    $region32: #{tpu_custom_call.1} parent=5 // pred_fallthru
      _
    %p2016 = scmp.le.s32.totalorder 2, %s9
    // Predicated region
    $region37: #{tpu_custom_call.1} parent=5 // pred_check
      %p2017 = pneg %p2016
    $region38: #{tpu_custom_call.1} parent=5 // pred_check_branch
      %2019 = sbr.rel (%p2017) target = $region40
    $region39: #{tpu_custom_call.1} parent=5 // pred_region
      %s2020 = ssub.s32 %s9, 2
      // Predicated region
      $region41: #{tpu_custom_call.1} parent=39 // pred_check
        %p2021 = pneg %p130
      $region42: #{tpu_custom_call.1} parent=39 // pred_check_branch
        %2023 = sbr.rel (%p2021) target = $region44
      $region43: #{tpu_custom_call.1} parent=39 // pred_region
        %p2024 = scmp.lt.s32.totalorder %s20, 1
        %s2025 = scalar_select %p2024, %s20, 1
        %p2026 = scmp.lt.s32.totalorder %s21, 0
        %s2027 = scalar_select %p2026, %s21, 0
        %s2028 = smul.addr %s2025, 10
        %s2029 = sadd.s32 %s2027, %s2028
        %s2030 = smul.addr %s2029, 4
        %s2031 = scalar_lea.vmem %s3, %s2030
      $region44: #{tpu_custom_call.1} parent=39 // pred_fallthru
        _
    $region40: #{tpu_custom_call.1} parent=5 // pred_fallthru
      _
  $region6: #{tpu_custom_call.1} parent=0 // loop_footer
    %s13 = sadd.s32 1, %s9
  $region7: #{tpu_custom_call.1} parent=0 // loop_footer_branch
    %8 = sbr.rel target = $region3
  $region8: #{tpu_custom_call.1} parent=0 // loop_exit
    _

</llo_original>
